<compile_context>
chip_gen: v6e
topology: v6e:2x2x1
jax: 0.10.0
libtpu: 0.0.40
codegen_flags: <defaults>
</compile_context>

<pallas_src>
import functools
import math

import jax
import jax.numpy as jnp
from jax.experimental import pallas as pl
from jax.experimental.pallas import tpu as pltpu

# ----------------------------- model config (synthetic) ----------------------
PATCH = 4            # patch_size
EMBED_DIM = 32       # hidden_size
NUM_HEADS = 2
HEAD_DIM = EMBED_DIM // NUM_HEADS
MLP_DIM = 64
NUM_LAYERS = 2
OUT_INDICES = (0, 1)  # out_indices_cfg[...] equivalent (indices into hidden_states[1:])
EPS = 1e-6


# ----------------------------- in-kernel helpers ------------------------------
def _layer_norm(v, w, b):
    # f32 statistics (biased variance, matches torch.nn.LayerNorm)
    mu = jnp.mean(v, axis=-1, keepdims=True)
    var = jnp.mean((v - mu) ** 2, axis=-1, keepdims=True)
    return (v - mu) * jax.lax.rsqrt(var + EPS) * w + b


def _gelu_tanh(x):
    # gelu_pytorch_tanh (SigLIP activation), f32
    c = math.sqrt(2.0 / math.pi)
    return 0.5 * x * (1.0 + jnp.tanh(c * (x + 0.044715 * x * x * x)))


# ----------------------------- fused Pallas kernel ----------------------------
def _fused_encoder_kernel(
    xp_ref,                      # (bb, S, CPP_PAD)        bf16
    pw_ref, pb_ref, pos_ref,     # (CPP_PAD, D) bf16, (1, D) f32, (S, D) f32
    ln1w_ref, ln1b_ref,          # (L, 1, D) f32
    wqkv_ref, bqkv_ref,          # (L, D, 3*D) bf16 (scale folded into Q), (L, 1, 3*D) f32
    wo_ref, bo_ref,              # (L, D, D) bf16, (L, 1, D) f32
    ln2w_ref, ln2b_ref,          # (L, 1, D) f32
    w1_ref, b1_ref,              # (L, D, M) bf16, (L, 1, M) f32
    w2_ref, b2_ref,              # (L, M, D) bf16, (L, 1, D) f32
    o_ref,                       # (bb, n_out, S, D)       f32
    *, num_layers, num_heads, head_dim, out_indices,
):
    bb, S, cpp_pad = xp_ref.shape
    D = pos_ref.shape[-1]
    T = bb * S
    bf16 = jnp.bfloat16
    f32 = jnp.float32

    # ---- patch embedding + positional embedding (fused; f32 accumulation) ----
    xflat = xp_ref[...].reshape(T, cpp_pad)                       # merge leading dims (free)
    emb = jnp.dot(xflat, pw_ref[...], preferred_element_type=f32) + pb_ref[...]
    x = emb.reshape(bb, S, D) + pos_ref[...][None]                # (bb, S, D) f32 residual

    # Static loop over layers: weights stay VMEM-resident, hidden state stays
    # on-chip for the whole backbone.
    for li in range(num_layers):
        # ---------------- self-attention block (pre-LN) ----------------
        h = _layer_norm(x, ln1w_ref[li], ln1b_ref[li])            # (bb, S, D) f32
        h2d = h.reshape(T, D).astype(bf16)

        # ONE wide fused Q|K|V projection: (T, D) @ (D, 3*D).  The 1/sqrt(hd)
        # softmax scale is already folded into the Q columns/bias at pack time.
        qkv = jnp.dot(h2d, wqkv_ref[li], preferred_element_type=f32) + bqkv_ref[li]  # (T, 3D)

        # Per-head score/context (tiny matmuls), batched over the image dim.
        ctx_heads = []
        for hh in range(num_heads):
            lo = hh * head_dim
            q_h = qkv[:, lo:lo + head_dim].reshape(bb, S, head_dim)
            k_h = qkv[:, D + lo:D + lo + head_dim].reshape(bb, S, head_dim)
            v_h = qkv[:, 2 * D + lo:2 * D + lo + head_dim].reshape(bb, S, head_dim)

            s_ = jnp.einsum("bqd,bkd->bqk", q_h.astype(bf16), k_h.astype(bf16),
                            preferred_element_type=f32)           # (bb, S, S) f32
            s_ = s_ - jnp.max(s_, axis=-1, keepdims=True)
            p = jnp.exp(s_)
            # approx reciprocal (EUP slot); use exact divide if bit-level parity
            # against the PyTorch reference is being validated.
            p = p * pl.reciprocal(jnp.sum(p, axis=-1, keepdims=True), approx=True)
            ctx_heads.append(
                jnp.einsum("bqk,bkd->bqd", p.astype(bf16), v_h.astype(bf16),
                           preferred_element_type=f32))           # (bb, S, hd)

        # concat heads along lanes == torch's reshape(S, NH*hd); one wo matmul.
        ctx = jnp.concatenate(ctx_heads, axis=-1).reshape(T, D)
        attn = jnp.dot(ctx.astype(bf16), wo_ref[li], preferred_element_type=f32) + bo_ref[li]
        x = x + attn.reshape(bb, S, D)

        # ---------------- MLP block (pre-LN) ----------------
        h2 = _layer_norm(x, ln2w_ref[li], ln2b_ref[li])
        z = jnp.dot(h2.reshape(T, D).astype(bf16), w1_ref[li],
                    preferred_element_type=f32) + b1_ref[li]
        z = _gelu_tanh(z)                                         # f32 (v5e-safe)
        z = jnp.dot(z.astype(bf16), w2_ref[li], preferred_element_type=f32) + b2_ref[li]
        x = x + z.reshape(bb, S, D)

        # emit only the requested hidden states (== y.hidden_states[1:][i])
        if li in out_indices:
            o_ref[:, out_indices.index(li)] = x


# ----------------------------- parameter init ---------------------------------
def init_params(key, in_ch, num_tokens):
    patch_in = in_ch * PATCH * PATCH

    def nrm(k, shape, scale=0.02):
        return (scale * jax.random.normal(k, shape)).astype(jnp.float32)

    keys = jax.random.split(key, 4 + NUM_LAYERS)
    params = {
        "patch_w": nrm(keys[0], (patch_in, EMBED_DIM)),
        "patch_b": jnp.zeros((1, EMBED_DIM), jnp.float32),
        "pos_emb": nrm(keys[1], (num_tokens, EMBED_DIM)),
        "layers": [],
    }
    for li in range(NUM_LAYERS):
        lk = jax.random.split(keys[4 + li], 8)
        params["layers"].append({
            "ln1_w": jnp.ones((1, EMBED_DIM), jnp.float32),
            "ln1_b": jnp.zeros((1, EMBED_DIM), jnp.float32),
            "wq": nrm(lk[0], (EMBED_DIM, EMBED_DIM)),
            "bq": jnp.zeros((1, EMBED_DIM), jnp.float32),
            "wk": nrm(lk[1], (EMBED_DIM, EMBED_DIM)),
            "bk": jnp.zeros((1, EMBED_DIM), jnp.float32),
            "wv": nrm(lk[2], (EMBED_DIM, EMBED_DIM)),
            "bv": jnp.zeros((1, EMBED_DIM), jnp.float32),
            "wo": nrm(lk[3], (EMBED_DIM, EMBED_DIM)),
            "bo": jnp.zeros((1, EMBED_DIM), jnp.float32),
            "ln2_w": jnp.ones((1, EMBED_DIM), jnp.float32),
            "ln2_b": jnp.zeros((1, EMBED_DIM), jnp.float32),
            "w1": nrm(lk[4], (EMBED_DIM, MLP_DIM)),
            "b1": jnp.zeros((1, MLP_DIM), jnp.float32),
            "w2": nrm(lk[5], (MLP_DIM, EMBED_DIM)),
            "b2": jnp.zeros((1, EMBED_DIM), jnp.float32),
        })
    return params


def pack_params(params):
    """Stack per-layer weights on a leading layer axis, fuse Q|K|V into one wide
    (D, 3*D) weight with the softmax scale folded into the Q columns, pad the
    patch-embed rows to a 128-lane multiple, and cast matmul weights to bf16."""
    scale = 1.0 / math.sqrt(HEAD_DIM)

    def stack(key):
        return jnp.stack([lp[key] for lp in params["layers"]])

    wqkv = jnp.stack([
        jnp.concatenate([lp["wq"] * scale, lp["wk"], lp["wv"]], axis=-1)  # (D, 3D)
        for lp in params["layers"]])
    bqkv = jnp.stack([
        jnp.concatenate([lp["bq"] * scale, lp["bk"], lp["bv"]], axis=-1)  # (1, 3D)
        for lp in params["layers"]])

    pw = params["patch_w"]                      # (CPP, D)
    cpp = pw.shape[0]
    cpp_pad = ((cpp + 127) // 128) * 128        # pad K dim to full 128 lanes
    pw = jnp.pad(pw, ((0, cpp_pad - cpp), (0, 0)))

    return {
        "patch_w": pw.astype(jnp.bfloat16),
        "patch_b": params["patch_b"],
        "pos_emb": params["pos_emb"],
        "ln1_w": stack("ln1_w"), "ln1_b": stack("ln1_b"),
        "wqkv": wqkv.astype(jnp.bfloat16), "bqkv": bqkv,
        "wo": stack("wo").astype(jnp.bfloat16), "bo": stack("bo"),
        "ln2_w": stack("ln2_w"), "ln2_b": stack("ln2_b"),
        "w1": stack("w1").astype(jnp.bfloat16), "b1": stack("b1"),
        "w2": stack("w2").astype(jnp.bfloat16), "b2": stack("b2"),
    }


# ----------------------------- forward (HfEncoder.forward) --------------------
def hf_encoder_forward(x, packed):
    # x: (B, C, height, width) -- NCHW like the PyTorch module
    B, C, height, width = x.shape
    H, W = height // PATCH, width // PATCH
    S = H * W
    CPP = C * PATCH * PATCH
    CPP_PAD = packed["patch_w"].shape[0]
    n_out = len(OUT_INDICES)

    # Patch extraction (conv with kernel=stride=patch_size) as a matmul input:
    # (B,C,H,p,W,p) -> (B,H,W,C,p,p) -> (B, S, C*p*p); zero-pad K to 128 lanes
    # (patch_w rows are padded identically) and cast to bf16 to halve DMA bytes.
    xp = (
        x.reshape(B, C, H, PATCH, W, PATCH)
        .transpose(0, 2, 4, 1, 3, 5)
        .reshape(B, S, CPP)
    )
    xp = jnp.pad(xp, ((0, 0), (0, 0), (0, CPP_PAD - CPP))).astype(jnp.bfloat16)

    # interpolate_pos_encoding=True; here the pos table already matches H*W tokens.
    # TODO(synk): bilinear interpolation of the position table for mismatched grids.

    # At most 2 batch blocks: both TCs on v7x, and only 1-2 grid steps (instead
    # of B) on single-TC v5e/v6e while widening the matmul M dim to bb*S rows.
    num_blocks = 2 if (B >= 2 and B % 2 == 0) else 1
    bb = B // num_blocks

    kernel = functools.partial(
        _fused_encoder_kernel,
        num_layers=NUM_LAYERS, num_heads=NUM_HEADS, head_dim=HEAD_DIM,
        out_indices=tuple(OUT_INDICES),
    )

    weight_names = ("patch_w", "patch_b", "pos_emb",
                    "ln1_w", "ln1_b", "wqkv", "bqkv", "wo", "bo",
                    "ln2_w", "ln2_b", "w1", "b1", "w2", "b2")
    weights = [packed[k] for k in weight_names]

    def full_spec(a):
        # Constant-index block: DMA'd once, reused across the (tiny) grid.
        nd = a.ndim
        return pl.BlockSpec(a.shape, lambda b, _nd=nd: (0,) * _nd)

    out = pl.pallas_call(
        kernel,
        out_shape=jax.ShapeDtypeStruct((B, n_out, S, EMBED_DIM), jnp.float32),
        grid=(num_blocks,),
        in_specs=[pl.BlockSpec((bb, S, CPP_PAD), lambda b: (b, 0, 0))]
                 + [full_spec(w) for w in weights],
        out_specs=pl.BlockSpec((bb, n_out, S, EMBED_DIM), lambda b: (b, 0, 0, 0)),
        compiler_params=pltpu.CompilerParams(
            dimension_semantics=("parallel",),       # megacore split on v7x
            vmem_limit_bytes=32 * 1024 * 1024,
        ),
    )(xp, *weights)

    features = []
    for j in range(n_out):
        fea = out[:, j]  # (B, S, D); SigLIP has no CLS token so S == H*W already
        features.append(
            fea.reshape(B, H, W, EMBED_DIM).transpose(0, 3, 1, 2)  # (B, D, H, W)
        )
    return features


# ----------------------------- main --------------------------------------------
if __name__ == "__main__":
    key = jax.random.PRNGKey(0)
    k_x, k_p = jax.random.split(key)

    B, C, IMG = 2, 3, 16
    H = W = IMG // PATCH
    x = jax.random.normal(k_x, (B, C, IMG, IMG), dtype=jnp.float32)
    params = init_params(k_p, C, H * W)
    packed = pack_params(params)

    feats = hf_encoder_forward(x, packed)
    feats = jax.block_until_ready(feats)

    assert len(feats) == len(OUT_INDICES)
    for f in feats:
        assert f.shape == (B, EMBED_DIM, H, W), f.shape
        assert bool(jnp.all(jnp.isfinite(f)))
    print("KERNEL_OK")
</pallas_src>

<mosaic_0001>
module attributes {stable_mosaic.version = 11 : i64} {
  func.func @_fused_encoder_kernel(%arg0: i32, %arg1: memref<1x16x128xbf16, #tpu.memory_space<vmem>>, %arg2: memref<128x32xbf16, #tpu.memory_space<vmem>>, %arg3: memref<1x32xf32, #tpu.memory_space<vmem>>, %arg4: memref<16x32xf32, #tpu.memory_space<vmem>>, %arg5: memref<2x1x32xf32, #tpu.memory_space<vmem>>, %arg6: memref<2x1x32xf32, #tpu.memory_space<vmem>>, %arg7: memref<2x32x96xbf16, #tpu.memory_space<vmem>>, %arg8: memref<2x1x96xf32, #tpu.memory_space<vmem>>, %arg9: memref<2x32x32xbf16, #tpu.memory_space<vmem>>, %arg10: memref<2x1x32xf32, #tpu.memory_space<vmem>>, %arg11: memref<2x1x32xf32, #tpu.memory_space<vmem>>, %arg12: memref<2x1x32xf32, #tpu.memory_space<vmem>>, %arg13: memref<2x32x64xbf16, #tpu.memory_space<vmem>>, %arg14: memref<2x1x64xf32, #tpu.memory_space<vmem>>, %arg15: memref<2x64x32xbf16, #tpu.memory_space<vmem>>, %arg16: memref<2x1x32xf32, #tpu.memory_space<vmem>>, %arg17: memref<1x2x16x32xf32, #tpu.memory_space<vmem>>) attributes {dimension_semantics = [#tpu.dimension_semantics<parallel>], iteration_bounds = array<i64: 2>, scalar_prefetch = 0 : i64, scratch_operands = 0 : i64, tpu.core_type = #tpu.core_type<tc>, window_params = [{transform_indices = @transform_0, window_bounds = array<i64: 1, 16, 128>}, {pipeline_mode = #tpu.pipeline_mode<synchronous>, transform_indices = @transform_1, window_bounds = array<i64: 128, 32>}, {pipeline_mode = #tpu.pipeline_mode<synchronous>, transform_indices = @transform_2, window_bounds = array<i64: 1, 32>}, {pipeline_mode = #tpu.pipeline_mode<synchronous>, transform_indices = @transform_3, window_bounds = array<i64: 16, 32>}, {pipeline_mode = #tpu.pipeline_mode<synchronous>, transform_indices = @transform_4, window_bounds = array<i64: 2, 1, 32>}, {pipeline_mode = #tpu.pipeline_mode<synchronous>, transform_indices = @transform_5, window_bounds = array<i64: 2, 1, 32>}, {pipeline_mode = #tpu.pipeline_mode<synchronous>, transform_indices = @transform_6, window_bounds = array<i64: 2, 32, 96>}, {pipeline_mode = #tpu.pipeline_mode<synchronous>, transform_indices = @transform_7, window_bounds = array<i64: 2, 1, 96>}, {pipeline_mode = #tpu.pipeline_mode<synchronous>, transform_indices = @transform_8, window_bounds = array<i64: 2, 32, 32>}, {pipeline_mode = #tpu.pipeline_mode<synchronous>, transform_indices = @transform_9, window_bounds = array<i64: 2, 1, 32>}, {pipeline_mode = #tpu.pipeline_mode<synchronous>, transform_indices = @transform_10, window_bounds = array<i64: 2, 1, 32>}, {pipeline_mode = #tpu.pipeline_mode<synchronous>, transform_indices = @transform_11, window_bounds = array<i64: 2, 1, 32>}, {pipeline_mode = #tpu.pipeline_mode<synchronous>, transform_indices = @transform_12, window_bounds = array<i64: 2, 32, 64>}, {pipeline_mode = #tpu.pipeline_mode<synchronous>, transform_indices = @transform_13, window_bounds = array<i64: 2, 1, 64>}, {pipeline_mode = #tpu.pipeline_mode<synchronous>, transform_indices = @transform_14, window_bounds = array<i64: 2, 64, 32>}, {pipeline_mode = #tpu.pipeline_mode<synchronous>, transform_indices = @transform_15, window_bounds = array<i64: 2, 1, 32>}, {transform_indices = @transform_16, window_bounds = array<i64: 1, 2, 16, 32>}]} {
    %c0 = arith.constant 0 : index
    %c0_0 = arith.constant 0 : index
    %c0_1 = arith.constant 0 : index
    %0 = vector.load %arg1[%c0, %c0_0, %c0_1] : memref<1x16x128xbf16, #tpu.memory_space<vmem>>, vector<1x16x128xbf16>
    %1 = vector.shape_cast %0 : vector<1x16x128xbf16> to vector<16x128xbf16>
    %c0_2 = arith.constant 0 : index
    %c0_3 = arith.constant 0 : index
    %2 = vector.load %arg2[%c0_2, %c0_3] : memref<128x32xbf16, #tpu.memory_space<vmem>>, vector<128x32xbf16>
    %cst = arith.constant dense<0.000000e+00> : vector<16x32xf32>
    %3 = tpu.matmul %1, %2, %cst {dimension_numbers = #tpu.dot_dimension_numbers<[1], [0], [0], [1], [0, 0, 1, 1], [], []>} : vector<16x128xbf16>, vector<128x32xbf16>, vector<16x32xf32> -> vector<16x32xf32>
    %c0_4 = arith.constant 0 : index
    %c0_5 = arith.constant 0 : index
    %4 = vector.load %arg3[%c0_4, %c0_5] : memref<1x32xf32, #tpu.memory_space<vmem>>, vector<1x32xf32>
    %5 = vector.broadcast %4 : vector<1x32xf32> to vector<16x32xf32>
    %6 = arith.addf %3, %5 : vector<16x32xf32>
    %7 = vector.shape_cast %6 : vector<16x32xf32> to vector<1x16x32xf32>
    %c0_6 = arith.constant 0 : index
    %c0_7 = arith.constant 0 : index
    %8 = vector.load %arg4[%c0_6, %c0_7] : memref<16x32xf32, #tpu.memory_space<vmem>>, vector<16x32xf32>
    %9 = vector.shape_cast %8 : vector<16x32xf32> to vector<1x16x32xf32>
    %10 = arith.addf %7, %9 : vector<1x16x32xf32>
    %c0_8 = arith.constant 0 : index
    %c0_9 = arith.constant 0 : index
    %c0_10 = arith.constant 0 : index
    %11 = vector.load %arg5[%c0_8, %c0_9, %c0_10] : memref<2x1x32xf32, #tpu.memory_space<vmem>>, vector<1x1x32xf32>
    %12 = vector.shape_cast %11 : vector<1x1x32xf32> to vector<1x32xf32>
    %c0_11 = arith.constant 0 : index
    %c0_12 = arith.constant 0 : index
    %c0_13 = arith.constant 0 : index
    %13 = vector.load %arg6[%c0_11, %c0_12, %c0_13] : memref<2x1x32xf32, #tpu.memory_space<vmem>>, vector<1x1x32xf32>
    %14 = vector.shape_cast %13 : vector<1x1x32xf32> to vector<1x32xf32>
    %cst_14 = arith.constant dense<0.000000e+00> : vector<1x16xf32>
    %15 = vector.multi_reduction <add>, %10, %cst_14 [2] : vector<1x16x32xf32> to vector<1x16xf32>
    %16 = vector.shape_cast %15 : vector<1x16xf32> to vector<1x16x1xf32>
    %cst_15 = arith.constant 3.200000e+01 : f32
    %17 = vector.broadcast %cst_15 : f32 to vector<1x16x1xf32>
    %18 = arith.divf %16, %17 : vector<1x16x1xf32>
    %19 = vector.broadcast %18 : vector<1x16x1xf32> to vector<1x16x32xf32>
    %20 = arith.subf %10, %19 : vector<1x16x32xf32>
    %21 = arith.mulf %20, %20 : vector<1x16x32xf32>
    %cst_16 = arith.constant dense<0.000000e+00> : vector<1x16xf32>
    %22 = vector.multi_reduction <add>, %21, %cst_16 [2] : vector<1x16x32xf32> to vector<1x16xf32>
    %23 = vector.shape_cast %22 : vector<1x16xf32> to vector<1x16x1xf32>
    %cst_17 = arith.constant 3.200000e+01 : f32
    %24 = vector.broadcast %cst_17 : f32 to vector<1x16x1xf32>
    %25 = arith.divf %23, %24 : vector<1x16x1xf32>
    %26 = vector.broadcast %18 : vector<1x16x1xf32> to vector<1x16x32xf32>
    %27 = arith.subf %10, %26 : vector<1x16x32xf32>
    %cst_18 = arith.constant 9.99999997E-7 : f32
    %28 = vector.broadcast %cst_18 : f32 to vector<1x16x1xf32>
    %29 = arith.addf %25, %28 : vector<1x16x1xf32>
    %30 = math.rsqrt %29 : vector<1x16x1xf32>
    %31 = vector.broadcast %30 : vector<1x16x1xf32> to vector<1x16x32xf32>
    %32 = arith.mulf %27, %31 : vector<1x16x32xf32>
    %33 = vector.shape_cast %12 : vector<1x32xf32> to vector<1x1x32xf32>
    %34 = vector.broadcast %33 : vector<1x1x32xf32> to vector<1x16x32xf32>
    %35 = arith.mulf %32, %34 : vector<1x16x32xf32>
    %36 = vector.shape_cast %14 : vector<1x32xf32> to vector<1x1x32xf32>
    %37 = vector.broadcast %36 : vector<1x1x32xf32> to vector<1x16x32xf32>
    %38 = arith.addf %35, %37 : vector<1x16x32xf32>
    %39 = vector.shape_cast %38 : vector<1x16x32xf32> to vector<16x32xf32>
    %40 = arith.truncf %39 : vector<16x32xf32> to vector<16x32xbf16>
    %c0_19 = arith.constant 0 : index
    %c0_20 = arith.constant 0 : index
    %c0_21 = arith.constant 0 : index
    %41 = vector.load %arg7[%c0_19, %c0_20, %c0_21] : memref<2x32x96xbf16, #tpu.memory_space<vmem>>, vector<1x32x96xbf16>
    %42 = vector.shape_cast %41 : vector<1x32x96xbf16> to vector<32x96xbf16>
    %cst_22 = arith.constant dense<0.000000e+00> : vector<16x96xf32>
    %43 = tpu.matmul %40, %42, %cst_22 {dimension_numbers = #tpu.dot_dimension_numbers<[1], [0], [0], [1], [0, 0, 1, 1], [], []>} : vector<16x32xbf16>, vector<32x96xbf16>, vector<16x96xf32> -> vector<16x96xf32>
    %c0_23 = arith.constant 0 : index
    %c0_24 = arith.constant 0 : index
    %c0_25 = arith.constant 0 : index
    %44 = vector.load %arg8[%c0_23, %c0_24, %c0_25] : memref<2x1x96xf32, #tpu.memory_space<vmem>>, vector<1x1x96xf32>
    %45 = vector.shape_cast %44 : vector<1x1x96xf32> to vector<1x96xf32>
    %46 = vector.broadcast %45 : vector<1x96xf32> to vector<16x96xf32>
    %47 = arith.addf %43, %46 : vector<16x96xf32>
    %48 = vector.extract_strided_slice %47 {offsets = [0, 0], sizes = [16, 16], strides = [1, 1]} : vector<16x96xf32> to vector<16x16xf32>
    %49 = vector.shape_cast %48 : vector<16x16xf32> to vector<1x16x16xf32>
    %50 = vector.extract_strided_slice %47 {offsets = [0, 32], sizes = [16, 16], strides = [1, 1]} : vector<16x96xf32> to vector<16x16xf32>
    %51 = vector.shape_cast %50 : vector<16x16xf32> to vector<1x16x16xf32>
    %52 = vector.extract_strided_slice %47 {offsets = [0, 64], sizes = [16, 16], strides = [1, 1]} : vector<16x96xf32> to vector<16x16xf32>
    %53 = vector.shape_cast %52 : vector<16x16xf32> to vector<1x16x16xf32>
    %54 = arith.truncf %49 : vector<1x16x16xf32> to vector<1x16x16xbf16>
    %55 = arith.truncf %51 : vector<1x16x16xf32> to vector<1x16x16xbf16>
    "tpu.trace_start"() <{level = 10 : i32, message = "bqd,bkd->bqk"}> : () -> ()
    %cst_26 = arith.constant dense<0.000000e+00> : vector<1x16x16xf32>
    %56 = tpu.matmul %54, %55, %cst_26 {dimension_numbers = #tpu.dot_dimension_numbers<[2], [2], [1], [1], [0, 0, 0, 1, 1, 1], [0], [0]>} : vector<1x16x16xbf16>, vector<1x16x16xbf16>, vector<1x16x16xf32> -> vector<1x16x16xf32>
    "tpu.trace_stop"() : () -> ()
    %cst_27 = arith.constant dense<0xFF800000> : vector<1x16xf32>
    %57 = vector.multi_reduction <maximumf>, %56, %cst_27 [2] : vector<1x16x16xf32> to vector<1x16xf32>
    %58 = vector.shape_cast %57 : vector<1x16xf32> to vector<1x16x1xf32>
    %59 = vector.broadcast %58 : vector<1x16x1xf32> to vector<1x16x16xf32>
    %60 = arith.subf %56, %59 : vector<1x16x16xf32>
    %61 = math.exp %60 : vector<1x16x16xf32>
    %cst_28 = arith.constant dense<0.000000e+00> : vector<1x16xf32>
    %62 = vector.multi_reduction <add>, %61, %cst_28 [2] : vector<1x16x16xf32> to vector<1x16xf32>
    %63 = vector.shape_cast %62 : vector<1x16xf32> to vector<1x16x1xf32>
    %64 = tpu.reciprocal %63 {approx = true} : vector<1x16x1xf32> -> vector<1x16x1xf32>
    %65 = vector.broadcast %64 : vector<1x16x1xf32> to vector<1x16x16xf32>
    %66 = arith.mulf %61, %65 : vector<1x16x16xf32>
    %67 = arith.truncf %66 : vector<1x16x16xf32> to vector<1x16x16xbf16>
    %68 = arith.truncf %53 : vector<1x16x16xf32> to vector<1x16x16xbf16>
    "tpu.trace_start"() <{level = 10 : i32, message = "bqk,bkd->bqd"}> : () -> ()
    %cst_29 = arith.constant dense<0.000000e+00> : vector<1x16x16xf32>
    %69 = tpu.matmul %67, %68, %cst_29 {dimension_numbers = #tpu.dot_dimension_numbers<[2], [1], [1], [2], [0, 0, 0, 1, 1, 2], [0], [0]>} : vector<1x16x16xbf16>, vector<1x16x16xbf16>, vector<1x16x16xf32> -> vector<1x16x16xf32>
    "tpu.trace_stop"() : () -> ()
    %70 = vector.extract_strided_slice %47 {offsets = [0, 16], sizes = [16, 16], strides = [1, 1]} : vector<16x96xf32> to vector<16x16xf32>
    %71 = vector.shape_cast %70 : vector<16x16xf32> to vector<1x16x16xf32>
    %72 = vector.extract_strided_slice %47 {offsets = [0, 48], sizes = [16, 16], strides = [1, 1]} : vector<16x96xf32> to vector<16x16xf32>
    %73 = vector.shape_cast %72 : vector<16x16xf32> to vector<1x16x16xf32>
    %74 = vector.extract_strided_slice %47 {offsets = [0, 80], sizes = [16, 16], strides = [1, 1]} : vector<16x96xf32> to vector<16x16xf32>
    %75 = vector.shape_cast %74 : vector<16x16xf32> to vector<1x16x16xf32>
    %76 = arith.truncf %71 : vector<1x16x16xf32> to vector<1x16x16xbf16>
    %77 = arith.truncf %73 : vector<1x16x16xf32> to vector<1x16x16xbf16>
    "tpu.trace_start"() <{level = 10 : i32, message = "bqd,bkd->bqk"}> : () -> ()
    %cst_30 = arith.constant dense<0.000000e+00> : vector<1x16x16xf32>
    %78 = tpu.matmul %76, %77, %cst_30 {dimension_numbers = #tpu.dot_dimension_numbers<[2], [2], [1], [1], [0, 0, 0, 1, 1, 1], [0], [0]>} : vector<1x16x16xbf16>, vector<1x16x16xbf16>, vector<1x16x16xf32> -> vector<1x16x16xf32>
    "tpu.trace_stop"() : () -> ()
    %cst_31 = arith.constant dense<0xFF800000> : vector<1x16xf32>
    %79 = vector.multi_reduction <maximumf>, %78, %cst_31 [2] : vector<1x16x16xf32> to vector<1x16xf32>
    %80 = vector.shape_cast %79 : vector<1x16xf32> to vector<1x16x1xf32>
    %81 = vector.broadcast %80 : vector<1x16x1xf32> to vector<1x16x16xf32>
    %82 = arith.subf %78, %81 : vector<1x16x16xf32>
    %83 = math.exp %82 : vector<1x16x16xf32>
    %cst_32 = arith.constant dense<0.000000e+00> : vector<1x16xf32>
    %84 = vector.multi_reduction <add>, %83, %cst_32 [2] : vector<1x16x16xf32> to vector<1x16xf32>
    %85 = vector.shape_cast %84 : vector<1x16xf32> to vector<1x16x1xf32>
    %86 = tpu.reciprocal %85 {approx = true} : vector<1x16x1xf32> -> vector<1x16x1xf32>
    %87 = vector.broadcast %86 : vector<1x16x1xf32> to vector<1x16x16xf32>
    %88 = arith.mulf %83, %87 : vector<1x16x16xf32>
    %89 = arith.truncf %88 : vector<1x16x16xf32> to vector<1x16x16xbf16>
    %90 = arith.truncf %75 : vector<1x16x16xf32> to vector<1x16x16xbf16>
    "tpu.trace_start"() <{level = 10 : i32, message = "bqk,bkd->bqd"}> : () -> ()
    %cst_33 = arith.constant dense<0.000000e+00> : vector<1x16x16xf32>
    %91 = tpu.matmul %89, %90, %cst_33 {dimension_numbers = #tpu.dot_dimension_numbers<[2], [1], [1], [2], [0, 0, 0, 1, 1, 2], [0], [0]>} : vector<1x16x16xbf16>, vector<1x16x16xbf16>, vector<1x16x16xf32> -> vector<1x16x16xf32>
    "tpu.trace_stop"() : () -> ()
    %92 = tpu.concatenate %69, %91 in 2 : vector<1x16x16xf32>, vector<1x16x16xf32> -> vector<1x16x32xf32>
    %93 = vector.shape_cast %92 : vector<1x16x32xf32> to vector<16x32xf32>
    %94 = arith.truncf %93 : vector<16x32xf32> to vector<16x32xbf16>
    %c0_34 = arith.constant 0 : index
    %c0_35 = arith.constant 0 : index
    %c0_36 = arith.constant 0 : index
    %95 = vector.load %arg9[%c0_34, %c0_35, %c0_36] : memref<2x32x32xbf16, #tpu.memory_space<vmem>>, vector<1x32x32xbf16>
    %96 = vector.shape_cast %95 : vector<1x32x32xbf16> to vector<32x32xbf16>
    %cst_37 = arith.constant dense<0.000000e+00> : vector<16x32xf32>
    %97 = tpu.matmul %94, %96, %cst_37 {dimension_numbers = #tpu.dot_dimension_numbers<[1], [0], [0], [1], [0, 0, 1, 1], [], []>} : vector<16x32xbf16>, vector<32x32xbf16>, vector<16x32xf32> -> vector<16x32xf32>
    %c0_38 = arith.constant 0 : index
    %c0_39 = arith.constant 0 : index
    %c0_40 = arith.constant 0 : index
    %98 = vector.load %arg10[%c0_38, %c0_39, %c0_40] : memref<2x1x32xf32, #tpu.memory_space<vmem>>, vector<1x1x32xf32>
    %99 = vector.shape_cast %98 : vector<1x1x32xf32> to vector<1x32xf32>
    %100 = vector.broadcast %99 : vector<1x32xf32> to vector<16x32xf32>
    %101 = arith.addf %97, %100 : vector<16x32xf32>
    %102 = vector.shape_cast %101 : vector<16x32xf32> to vector<1x16x32xf32>
    %103 = arith.addf %10, %102 : vector<1x16x32xf32>
    %c0_41 = arith.constant 0 : index
    %c0_42 = arith.constant 0 : index
    %c0_43 = arith.constant 0 : index
    %104 = vector.load %arg11[%c0_41, %c0_42, %c0_43] : memref<2x1x32xf32, #tpu.memory_space<vmem>>, vector<1x1x32xf32>
    %105 = vector.shape_cast %104 : vector<1x1x32xf32> to vector<1x32xf32>
    %c0_44 = arith.constant 0 : index
    %c0_45 = arith.constant 0 : index
    %c0_46 = arith.constant 0 : index
    %106 = vector.load %arg12[%c0_44, %c0_45, %c0_46] : memref<2x1x32xf32, #tpu.memory_space<vmem>>, vector<1x1x32xf32>
    %107 = vector.shape_cast %106 : vector<1x1x32xf32> to vector<1x32xf32>
    %cst_47 = arith.constant dense<0.000000e+00> : vector<1x16xf32>
    %108 = vector.multi_reduction <add>, %103, %cst_47 [2] : vector<1x16x32xf32> to vector<1x16xf32>
    %109 = vector.shape_cast %108 : vector<1x16xf32> to vector<1x16x1xf32>
    %cst_48 = arith.constant 3.200000e+01 : f32
    %110 = vector.broadcast %cst_48 : f32 to vector<1x16x1xf32>
    %111 = arith.divf %109, %110 : vector<1x16x1xf32>
    %112 = vector.broadcast %111 : vector<1x16x1xf32> to vector<1x16x32xf32>
    %113 = arith.subf %103, %112 : vector<1x16x32xf32>
    %114 = arith.mulf %113, %113 : vector<1x16x32xf32>
    %cst_49 = arith.constant dense<0.000000e+00> : vector<1x16xf32>
    %115 = vector.multi_reduction <add>, %114, %cst_49 [2] : vector<1x16x32xf32> to vector<1x16xf32>
    %116 = vector.shape_cast %115 : vector<1x16xf32> to vector<1x16x1xf32>
    %cst_50 = arith.constant 3.200000e+01 : f32
    %117 = vector.broadcast %cst_50 : f32 to vector<1x16x1xf32>
    %118 = arith.divf %116, %117 : vector<1x16x1xf32>
    %119 = vector.broadcast %111 : vector<1x16x1xf32> to vector<1x16x32xf32>
    %120 = arith.subf %103, %119 : vector<1x16x32xf32>
    %cst_51 = arith.constant 9.99999997E-7 : f32
    %121 = vector.broadcast %cst_51 : f32 to vector<1x16x1xf32>
    %122 = arith.addf %118, %121 : vector<1x16x1xf32>
    %123 = math.rsqrt %122 : vector<1x16x1xf32>
    %124 = vector.broadcast %123 : vector<1x16x1xf32> to vector<1x16x32xf32>
    %125 = arith.mulf %120, %124 : vector<1x16x32xf32>
    %126 = vector.shape_cast %105 : vector<1x32xf32> to vector<1x1x32xf32>
    %127 = vector.broadcast %126 : vector<1x1x32xf32> to vector<1x16x32xf32>
    %128 = arith.mulf %125, %127 : vector<1x16x32xf32>
    %129 = vector.shape_cast %107 : vector<1x32xf32> to vector<1x1x32xf32>
    %130 = vector.broadcast %129 : vector<1x1x32xf32> to vector<1x16x32xf32>
    %131 = arith.addf %128, %130 : vector<1x16x32xf32>
    %132 = vector.shape_cast %131 : vector<1x16x32xf32> to vector<16x32xf32>
    %133 = arith.truncf %132 : vector<16x32xf32> to vector<16x32xbf16>
    %c0_52 = arith.constant 0 : index
    %c0_53 = arith.constant 0 : index
    %c0_54 = arith.constant 0 : index
    %134 = vector.load %arg13[%c0_52, %c0_53, %c0_54] : memref<2x32x64xbf16, #tpu.memory_space<vmem>>, vector<1x32x64xbf16>
    %135 = vector.shape_cast %134 : vector<1x32x64xbf16> to vector<32x64xbf16>
    %cst_55 = arith.constant dense<0.000000e+00> : vector<16x64xf32>
    %136 = tpu.matmul %133, %135, %cst_55 {dimension_numbers = #tpu.dot_dimension_numbers<[1], [0], [0], [1], [0, 0, 1, 1], [], []>} : vector<16x32xbf16>, vector<32x64xbf16>, vector<16x64xf32> -> vector<16x64xf32>
    %c0_56 = arith.constant 0 : index
    %c0_57 = arith.constant 0 : index
    %c0_58 = arith.constant 0 : index
    %137 = vector.load %arg14[%c0_56, %c0_57, %c0_58] : memref<2x1x64xf32, #tpu.memory_space<vmem>>, vector<1x1x64xf32>
    %138 = vector.shape_cast %137 : vector<1x1x64xf32> to vector<1x64xf32>
    %139 = vector.broadcast %138 : vector<1x64xf32> to vector<16x64xf32>
    %140 = arith.addf %136, %139 : vector<16x64xf32>
    %cst_59 = arith.constant 5.000000e-01 : f32
    %141 = vector.broadcast %cst_59 : f32 to vector<16x64xf32>
    %142 = arith.mulf %141, %140 : vector<16x64xf32>
    %cst_60 = arith.constant 4.471500e-02 : f32
    %143 = vector.broadcast %cst_60 : f32 to vector<16x64xf32>
    %144 = arith.mulf %143, %140 : vector<16x64xf32>
    %145 = arith.mulf %144, %140 : vector<16x64xf32>
    %146 = arith.mulf %145, %140 : vector<16x64xf32>
    %147 = arith.addf %140, %146 : vector<16x64xf32>
    %cst_61 = arith.constant 0.797884583 : f32
    %148 = vector.broadcast %cst_61 : f32 to vector<16x64xf32>
    %149 = arith.mulf %148, %147 : vector<16x64xf32>
    %150 = math.tanh %149 : vector<16x64xf32>
    %cst_62 = arith.constant 1.000000e+00 : f32
    %151 = vector.broadcast %cst_62 : f32 to vector<16x64xf32>
    %152 = arith.addf %151, %150 : vector<16x64xf32>
    %153 = arith.mulf %142, %152 : vector<16x64xf32>
    %154 = arith.truncf %153 : vector<16x64xf32> to vector<16x64xbf16>
    %c0_63 = arith.constant 0 : index
    %c0_64 = arith.constant 0 : index
    %c0_65 = arith.constant 0 : index
    %155 = vector.load %arg15[%c0_63, %c0_64, %c0_65] : memref<2x64x32xbf16, #tpu.memory_space<vmem>>, vector<1x64x32xbf16>
    %156 = vector.shape_cast %155 : vector<1x64x32xbf16> to vector<64x32xbf16>
    %cst_66 = arith.constant dense<0.000000e+00> : vector<16x32xf32>
    %157 = tpu.matmul %154, %156, %cst_66 {dimension_numbers = #tpu.dot_dimension_numbers<[1], [0], [0], [1], [0, 0, 1, 1], [], []>} : vector<16x64xbf16>, vector<64x32xbf16>, vector<16x32xf32> -> vector<16x32xf32>
    %c0_67 = arith.constant 0 : index
    %c0_68 = arith.constant 0 : index
    %c0_69 = arith.constant 0 : index
    %158 = vector.load %arg16[%c0_67, %c0_68, %c0_69] : memref<2x1x32xf32, #tpu.memory_space<vmem>>, vector<1x1x32xf32>
    %159 = vector.shape_cast %158 : vector<1x1x32xf32> to vector<1x32xf32>
    %160 = vector.broadcast %159 : vector<1x32xf32> to vector<16x32xf32>
    %161 = arith.addf %157, %160 : vector<16x32xf32>
    %162 = vector.shape_cast %161 : vector<16x32xf32> to vector<1x16x32xf32>
    %163 = arith.addf %103, %162 : vector<1x16x32xf32>
    %c0_70 = arith.constant 0 : index
    %c0_71 = arith.constant 0 : index
    %c0_72 = arith.constant 0 : index
    %c0_73 = arith.constant 0 : index
    %164 = vector.load %arg17[%c0_70, %c0_71, %c0_72, %c0_73] : memref<1x2x16x32xf32, #tpu.memory_space<vmem>>, vector<1x1x16x32xf32>
    %165 = vector.shape_cast %164 : vector<1x1x16x32xf32> to vector<1x16x32xf32>
    %166 = vector.shape_cast %163 : vector<1x16x32xf32> to vector<1x1x16x32xf32>
    tpu.vector_store %arg17[%c0_70, %c0_71, %c0_72, %c0_73], %166 {strides = array<i32>} : memref<1x2x16x32xf32, #tpu.memory_space<vmem>>, vector<1x1x16x32xf32>,
    %c1 = arith.constant 1 : index
    %c0_74 = arith.constant 0 : index
    %c0_75 = arith.constant 0 : index
    %167 = vector.load %arg5[%c1, %c0_74, %c0_75] : memref<2x1x32xf32, #tpu.memory_space<vmem>>, vector<1x1x32xf32>
    %168 = vector.shape_cast %167 : vector<1x1x32xf32> to vector<1x32xf32>
    %c1_76 = arith.constant 1 : index
    %c0_77 = arith.constant 0 : index
    %c0_78 = arith.constant 0 : index
    %169 = vector.load %arg6[%c1_76, %c0_77, %c0_78] : memref<2x1x32xf32, #tpu.memory_space<vmem>>, vector<1x1x32xf32>
    %170 = vector.shape_cast %169 : vector<1x1x32xf32> to vector<1x32xf32>
    %cst_79 = arith.constant dense<0.000000e+00> : vector<1x16xf32>
    %171 = vector.multi_reduction <add>, %163, %cst_79 [2] : vector<1x16x32xf32> to vector<1x16xf32>
    %172 = vector.shape_cast %171 : vector<1x16xf32> to vector<1x16x1xf32>
    %cst_80 = arith.constant 3.200000e+01 : f32
    %173 = vector.broadcast %cst_80 : f32 to vector<1x16x1xf32>
    %174 = arith.divf %172, %173 : vector<1x16x1xf32>
    %175 = vector.broadcast %174 : vector<1x16x1xf32> to vector<1x16x32xf32>
    %176 = arith.subf %163, %175 : vector<1x16x32xf32>
    %177 = arith.mulf %176, %176 : vector<1x16x32xf32>
    %cst_81 = arith.constant dense<0.000000e+00> : vector<1x16xf32>
    %178 = vector.multi_reduction <add>, %177, %cst_81 [2] : vector<1x16x32xf32> to vector<1x16xf32>
    %179 = vector.shape_cast %178 : vector<1x16xf32> to vector<1x16x1xf32>
    %cst_82 = arith.constant 3.200000e+01 : f32
    %180 = vector.broadcast %cst_82 : f32 to vector<1x16x1xf32>
    %181 = arith.divf %179, %180 : vector<1x16x1xf32>
    %182 = vector.broadcast %174 : vector<1x16x1xf32> to vector<1x16x32xf32>
    %183 = arith.subf %163, %182 : vector<1x16x32xf32>
    %cst_83 = arith.constant 9.99999997E-7 : f32
    %184 = vector.broadcast %cst_83 : f32 to vector<1x16x1xf32>
    %185 = arith.addf %181, %184 : vector<1x16x1xf32>
    %186 = math.rsqrt %185 : vector<1x16x1xf32>
    %187 = vector.broadcast %186 : vector<1x16x1xf32> to vector<1x16x32xf32>
    %188 = arith.mulf %183, %187 : vector<1x16x32xf32>
    %189 = vector.shape_cast %168 : vector<1x32xf32> to vector<1x1x32xf32>
    %190 = vector.broadcast %189 : vector<1x1x32xf32> to vector<1x16x32xf32>
    %191 = arith.mulf %188, %190 : vector<1x16x32xf32>
    %192 = vector.shape_cast %170 : vector<1x32xf32> to vector<1x1x32xf32>
    %193 = vector.broadcast %192 : vector<1x1x32xf32> to vector<1x16x32xf32>
    %194 = arith.addf %191, %193 : vector<1x16x32xf32>
    %195 = vector.shape_cast %194 : vector<1x16x32xf32> to vector<16x32xf32>
    %196 = arith.truncf %195 : vector<16x32xf32> to vector<16x32xbf16>
    %c1_84 = arith.constant 1 : index
    %c0_85 = arith.constant 0 : index
    %c0_86 = arith.constant 0 : index
    %197 = vector.load %arg7[%c1_84, %c0_85, %c0_86] : memref<2x32x96xbf16, #tpu.memory_space<vmem>>, vector<1x32x96xbf16>
    %198 = vector.shape_cast %197 : vector<1x32x96xbf16> to vector<32x96xbf16>
    %cst_87 = arith.constant dense<0.000000e+00> : vector<16x96xf32>
    %199 = tpu.matmul %196, %198, %cst_87 {dimension_numbers = #tpu.dot_dimension_numbers<[1], [0], [0], [1], [0, 0, 1, 1], [], []>} : vector<16x32xbf16>, vector<32x96xbf16>, vector<16x96xf32> -> vector<16x96xf32>
    %c1_88 = arith.constant 1 : index
    %c0_89 = arith.constant 0 : index
    %c0_90 = arith.constant 0 : index
    %200 = vector.load %arg8[%c1_88, %c0_89, %c0_90] : memref<2x1x96xf32, #tpu.memory_space<vmem>>, vector<1x1x96xf32>
    %201 = vector.shape_cast %200 : vector<1x1x96xf32> to vector<1x96xf32>
    %202 = vector.broadcast %201 : vector<1x96xf32> to vector<16x96xf32>
    %203 = arith.addf %199, %202 : vector<16x96xf32>
    %204 = vector.extract_strided_slice %203 {offsets = [0, 0], sizes = [16, 16], strides = [1, 1]} : vector<16x96xf32> to vector<16x16xf32>
    %205 = vector.shape_cast %204 : vector<16x16xf32> to vector<1x16x16xf32>
    %206 = vector.extract_strided_slice %203 {offsets = [0, 32], sizes = [16, 16], strides = [1, 1]} : vector<16x96xf32> to vector<16x16xf32>
    %207 = vector.shape_cast %206 : vector<16x16xf32> to vector<1x16x16xf32>
    %208 = vector.extract_strided_slice %203 {offsets = [0, 64], sizes = [16, 16], strides = [1, 1]} : vector<16x96xf32> to vector<16x16xf32>
    %209 = vector.shape_cast %208 : vector<16x16xf32> to vector<1x16x16xf32>
    %210 = arith.truncf %205 : vector<1x16x16xf32> to vector<1x16x16xbf16>
    %211 = arith.truncf %207 : vector<1x16x16xf32> to vector<1x16x16xbf16>
    "tpu.trace_start"() <{level = 10 : i32, message = "bqd,bkd->bqk"}> : () -> ()
    %cst_91 = arith.constant dense<0.000000e+00> : vector<1x16x16xf32>
    %212 = tpu.matmul %210, %211, %cst_91 {dimension_numbers = #tpu.dot_dimension_numbers<[2], [2], [1], [1], [0, 0, 0, 1, 1, 1], [0], [0]>} : vector<1x16x16xbf16>, vector<1x16x16xbf16>, vector<1x16x16xf32> -> vector<1x16x16xf32>
    "tpu.trace_stop"() : () -> ()
    %cst_92 = arith.constant dense<0xFF800000> : vector<1x16xf32>
    %213 = vector.multi_reduction <maximumf>, %212, %cst_92 [2] : vector<1x16x16xf32> to vector<1x16xf32>
    %214 = vector.shape_cast %213 : vector<1x16xf32> to vector<1x16x1xf32>
    %215 = vector.broadcast %214 : vector<1x16x1xf32> to vector<1x16x16xf32>
    %216 = arith.subf %212, %215 : vector<1x16x16xf32>
    %217 = math.exp %216 : vector<1x16x16xf32>
    %cst_93 = arith.constant dense<0.000000e+00> : vector<1x16xf32>
    %218 = vector.multi_reduction <add>, %217, %cst_93 [2] : vector<1x16x16xf32> to vector<1x16xf32>
    %219 = vector.shape_cast %218 : vector<1x16xf32> to vector<1x16x1xf32>
    %220 = tpu.reciprocal %219 {approx = true} : vector<1x16x1xf32> -> vector<1x16x1xf32>
    %221 = vector.broadcast %220 : vector<1x16x1xf32> to vector<1x16x16xf32>
    %222 = arith.mulf %217, %221 : vector<1x16x16xf32>
    %223 = arith.truncf %222 : vector<1x16x16xf32> to vector<1x16x16xbf16>
    %224 = arith.truncf %209 : vector<1x16x16xf32> to vector<1x16x16xbf16>
    "tpu.trace_start"() <{level = 10 : i32, message = "bqk,bkd->bqd"}> : () -> ()
    %cst_94 = arith.constant dense<0.000000e+00> : vector<1x16x16xf32>
    %225 = tpu.matmul %223, %224, %cst_94 {dimension_numbers = #tpu.dot_dimension_numbers<[2], [1], [1], [2], [0, 0, 0, 1, 1, 2], [0], [0]>} : vector<1x16x16xbf16>, vector<1x16x16xbf16>, vector<1x16x16xf32> -> vector<1x16x16xf32>
    "tpu.trace_stop"() : () -> ()
    %226 = vector.extract_strided_slice %203 {offsets = [0, 16], sizes = [16, 16], strides = [1, 1]} : vector<16x96xf32> to vector<16x16xf32>
    %227 = vector.shape_cast %226 : vector<16x16xf32> to vector<1x16x16xf32>
    %228 = vector.extract_strided_slice %203 {offsets = [0, 48], sizes = [16, 16], strides = [1, 1]} : vector<16x96xf32> to vector<16x16xf32>
    %229 = vector.shape_cast %228 : vector<16x16xf32> to vector<1x16x16xf32>
    %230 = vector.extract_strided_slice %203 {offsets = [0, 80], sizes = [16, 16], strides = [1, 1]} : vector<16x96xf32> to vector<16x16xf32>
    %231 = vector.shape_cast %230 : vector<16x16xf32> to vector<1x16x16xf32>
    %232 = arith.truncf %227 : vector<1x16x16xf32> to vector<1x16x16xbf16>
    %233 = arith.truncf %229 : vector<1x16x16xf32> to vector<1x16x16xbf16>
    "tpu.trace_start"() <{level = 10 : i32, message = "bqd,bkd->bqk"}> : () -> ()
    %cst_95 = arith.constant dense<0.000000e+00> : vector<1x16x16xf32>
    %234 = tpu.matmul %232, %233, %cst_95 {dimension_numbers = #tpu.dot_dimension_numbers<[2], [2], [1], [1], [0, 0, 0, 1, 1, 1], [0], [0]>} : vector<1x16x16xbf16>, vector<1x16x16xbf16>, vector<1x16x16xf32> -> vector<1x16x16xf32>
    "tpu.trace_stop"() : () -> ()
    %cst_96 = arith.constant dense<0xFF800000> : vector<1x16xf32>
    %235 = vector.multi_reduction <maximumf>, %234, %cst_96 [2] : vector<1x16x16xf32> to vector<1x16xf32>
    %236 = vector.shape_cast %235 : vector<1x16xf32> to vector<1x16x1xf32>
    %237 = vector.broadcast %236 : vector<1x16x1xf32> to vector<1x16x16xf32>
    %238 = arith.subf %234, %237 : vector<1x16x16xf32>
    %239 = math.exp %238 : vector<1x16x16xf32>
    %cst_97 = arith.constant dense<0.000000e+00> : vector<1x16xf32>
    %240 = vector.multi_reduction <add>, %239, %cst_97 [2] : vector<1x16x16xf32> to vector<1x16xf32>
    %241 = vector.shape_cast %240 : vector<1x16xf32> to vector<1x16x1xf32>
    %242 = tpu.reciprocal %241 {approx = true} : vector<1x16x1xf32> -> vector<1x16x1xf32>
    %243 = vector.broadcast %242 : vector<1x16x1xf32> to vector<1x16x16xf32>
    %244 = arith.mulf %239, %243 : vector<1x16x16xf32>
    %245 = arith.truncf %244 : vector<1x16x16xf32> to vector<1x16x16xbf16>
    %246 = arith.truncf %231 : vector<1x16x16xf32> to vector<1x16x16xbf16>
    "tpu.trace_start"() <{level = 10 : i32, message = "bqk,bkd->bqd"}> : () -> ()
    %cst_98 = arith.constant dense<0.000000e+00> : vector<1x16x16xf32>
    %247 = tpu.matmul %245, %246, %cst_98 {dimension_numbers = #tpu.dot_dimension_numbers<[2], [1], [1], [2], [0, 0, 0, 1, 1, 2], [0], [0]>} : vector<1x16x16xbf16>, vector<1x16x16xbf16>, vector<1x16x16xf32> -> vector<1x16x16xf32>
    "tpu.trace_stop"() : () -> ()
    %248 = tpu.concatenate %225, %247 in 2 : vector<1x16x16xf32>, vector<1x16x16xf32> -> vector<1x16x32xf32>
    %249 = vector.shape_cast %248 : vector<1x16x32xf32> to vector<16x32xf32>
    %250 = arith.truncf %249 : vector<16x32xf32> to vector<16x32xbf16>
    %c1_99 = arith.constant 1 : index
    %c0_100 = arith.constant 0 : index
    %c0_101 = arith.constant 0 : index
    %251 = vector.load %arg9[%c1_99, %c0_100, %c0_101] : memref<2x32x32xbf16, #tpu.memory_space<vmem>>, vector<1x32x32xbf16>
    %252 = vector.shape_cast %251 : vector<1x32x32xbf16> to vector<32x32xbf16>
    %cst_102 = arith.constant dense<0.000000e+00> : vector<16x32xf32>
    %253 = tpu.matmul %250, %252, %cst_102 {dimension_numbers = #tpu.dot_dimension_numbers<[1], [0], [0], [1], [0, 0, 1, 1], [], []>} : vector<16x32xbf16>, vector<32x32xbf16>, vector<16x32xf32> -> vector<16x32xf32>
    %c1_103 = arith.constant 1 : index
    %c0_104 = arith.constant 0 : index
    %c0_105 = arith.constant 0 : index
    %254 = vector.load %arg10[%c1_103, %c0_104, %c0_105] : memref<2x1x32xf32, #tpu.memory_space<vmem>>, vector<1x1x32xf32>
    %255 = vector.shape_cast %254 : vector<1x1x32xf32> to vector<1x32xf32>
    %256 = vector.broadcast %255 : vector<1x32xf32> to vector<16x32xf32>
    %257 = arith.addf %253, %256 : vector<16x32xf32>
    %258 = vector.shape_cast %257 : vector<16x32xf32> to vector<1x16x32xf32>
    %259 = arith.addf %163, %258 : vector<1x16x32xf32>
    %c1_106 = arith.constant 1 : index
    %c0_107 = arith.constant 0 : index
    %c0_108 = arith.constant 0 : index
    %260 = vector.load %arg11[%c1_106, %c0_107, %c0_108] : memref<2x1x32xf32, #tpu.memory_space<vmem>>, vector<1x1x32xf32>
    %261 = vector.shape_cast %260 : vector<1x1x32xf32> to vector<1x32xf32>
    %c1_109 = arith.constant 1 : index
    %c0_110 = arith.constant 0 : index
    %c0_111 = arith.constant 0 : index
    %262 = vector.load %arg12[%c1_109, %c0_110, %c0_111] : memref<2x1x32xf32, #tpu.memory_space<vmem>>, vector<1x1x32xf32>
    %263 = vector.shape_cast %262 : vector<1x1x32xf32> to vector<1x32xf32>
    %cst_112 = arith.constant dense<0.000000e+00> : vector<1x16xf32>
    %264 = vector.multi_reduction <add>, %259, %cst_112 [2] : vector<1x16x32xf32> to vector<1x16xf32>
    %265 = vector.shape_cast %264 : vector<1x16xf32> to vector<1x16x1xf32>
    %cst_113 = arith.constant 3.200000e+01 : f32
    %266 = vector.broadcast %cst_113 : f32 to vector<1x16x1xf32>
    %267 = arith.divf %265, %266 : vector<1x16x1xf32>
    %268 = vector.broadcast %267 : vector<1x16x1xf32> to vector<1x16x32xf32>
    %269 = arith.subf %259, %268 : vector<1x16x32xf32>
    %270 = arith.mulf %269, %269 : vector<1x16x32xf32>
    %cst_114 = arith.constant dense<0.000000e+00> : vector<1x16xf32>
    %271 = vector.multi_reduction <add>, %270, %cst_114 [2] : vector<1x16x32xf32> to vector<1x16xf32>
    %272 = vector.shape_cast %271 : vector<1x16xf32> to vector<1x16x1xf32>
    %cst_115 = arith.constant 3.200000e+01 : f32
    %273 = vector.broadcast %cst_115 : f32 to vector<1x16x1xf32>
    %274 = arith.divf %272, %273 : vector<1x16x1xf32>
    %275 = vector.broadcast %267 : vector<1x16x1xf32> to vector<1x16x32xf32>
    %276 = arith.subf %259, %275 : vector<1x16x32xf32>
    %cst_116 = arith.constant 9.99999997E-7 : f32
    %277 = vector.broadcast %cst_116 : f32 to vector<1x16x1xf32>
    %278 = arith.addf %274, %277 : vector<1x16x1xf32>
    %279 = math.rsqrt %278 : vector<1x16x1xf32>
    %280 = vector.broadcast %279 : vector<1x16x1xf32> to vector<1x16x32xf32>
    %281 = arith.mulf %276, %280 : vector<1x16x32xf32>
    %282 = vector.shape_cast %261 : vector<1x32xf32> to vector<1x1x32xf32>
    %283 = vector.broadcast %282 : vector<1x1x32xf32> to vector<1x16x32xf32>
    %284 = arith.mulf %281, %283 : vector<1x16x32xf32>
    %285 = vector.shape_cast %263 : vector<1x32xf32> to vector<1x1x32xf32>
    %286 = vector.broadcast %285 : vector<1x1x32xf32> to vector<1x16x32xf32>
    %287 = arith.addf %284, %286 : vector<1x16x32xf32>
    %288 = vector.shape_cast %287 : vector<1x16x32xf32> to vector<16x32xf32>
    %289 = arith.truncf %288 : vector<16x32xf32> to vector<16x32xbf16>
    %c1_117 = arith.constant 1 : index
    %c0_118 = arith.constant 0 : index
    %c0_119 = arith.constant 0 : index
    %290 = vector.load %arg13[%c1_117, %c0_118, %c0_119] : memref<2x32x64xbf16, #tpu.memory_space<vmem>>, vector<1x32x64xbf16>
    %291 = vector.shape_cast %290 : vector<1x32x64xbf16> to vector<32x64xbf16>
    %cst_120 = arith.constant dense<0.000000e+00> : vector<16x64xf32>
    %292 = tpu.matmul %289, %291, %cst_120 {dimension_numbers = #tpu.dot_dimension_numbers<[1], [0], [0], [1], [0, 0, 1, 1], [], []>} : vector<16x32xbf16>, vector<32x64xbf16>, vector<16x64xf32> -> vector<16x64xf32>
    %c1_121 = arith.constant 1 : index
    %c0_122 = arith.constant 0 : index
    %c0_123 = arith.constant 0 : index
    %293 = vector.load %arg14[%c1_121, %c0_122, %c0_123] : memref<2x1x64xf32, #tpu.memory_space<vmem>>, vector<1x1x64xf32>
    %294 = vector.shape_cast %293 : vector<1x1x64xf32> to vector<1x64xf32>
    %295 = vector.broadcast %294 : vector<1x64xf32> to vector<16x64xf32>
    %296 = arith.addf %292, %295 : vector<16x64xf32>
    %cst_124 = arith.constant 5.000000e-01 : f32
    %297 = vector.broadcast %cst_124 : f32 to vector<16x64xf32>
    %298 = arith.mulf %297, %296 : vector<16x64xf32>
    %cst_125 = arith.constant 4.471500e-02 : f32
    %299 = vector.broadcast %cst_125 : f32 to vector<16x64xf32>
    %300 = arith.mulf %299, %296 : vector<16x64xf32>
    %301 = arith.mulf %300, %296 : vector<16x64xf32>
    %302 = arith.mulf %301, %296 : vector<16x64xf32>
    %303 = arith.addf %296, %302 : vector<16x64xf32>
    %cst_126 = arith.constant 0.797884583 : f32
    %304 = vector.broadcast %cst_126 : f32 to vector<16x64xf32>
    %305 = arith.mulf %304, %303 : vector<16x64xf32>
    %306 = math.tanh %305 : vector<16x64xf32>
    %cst_127 = arith.constant 1.000000e+00 : f32
    %307 = vector.broadcast %cst_127 : f32 to vector<16x64xf32>
    %308 = arith.addf %307, %306 : vector<16x64xf32>
    %309 = arith.mulf %298, %308 : vector<16x64xf32>
    %310 = arith.truncf %309 : vector<16x64xf32> to vector<16x64xbf16>
    %c1_128 = arith.constant 1 : index
    %c0_129 = arith.constant 0 : index
    %c0_130 = arith.constant 0 : index
    %311 = vector.load %arg15[%c1_128, %c0_129, %c0_130] : memref<2x64x32xbf16, #tpu.memory_space<vmem>>, vector<1x64x32xbf16>
    %312 = vector.shape_cast %311 : vector<1x64x32xbf16> to vector<64x32xbf16>
    %cst_131 = arith.constant dense<0.000000e+00> : vector<16x32xf32>
    %313 = tpu.matmul %310, %312, %cst_131 {dimension_numbers = #tpu.dot_dimension_numbers<[1], [0], [0], [1], [0, 0, 1, 1], [], []>} : vector<16x64xbf16>, vector<64x32xbf16>, vector<16x32xf32> -> vector<16x32xf32>
    %c1_132 = arith.constant 1 : index
    %c0_133 = arith.constant 0 : index
    %c0_134 = arith.constant 0 : index
    %314 = vector.load %arg16[%c1_132, %c0_133, %c0_134] : memref<2x1x32xf32, #tpu.memory_space<vmem>>, vector<1x1x32xf32>
    %315 = vector.shape_cast %314 : vector<1x1x32xf32> to vector<1x32xf32>
    %316 = vector.broadcast %315 : vector<1x32xf32> to vector<16x32xf32>
    %317 = arith.addf %313, %316 : vector<16x32xf32>
    %318 = vector.shape_cast %317 : vector<16x32xf32> to vector<1x16x32xf32>
    %319 = arith.addf %259, %318 : vector<1x16x32xf32>
    %c0_135 = arith.constant 0 : index
    %c1_136 = arith.constant 1 : index
    %c0_137 = arith.constant 0 : index
    %c0_138 = arith.constant 0 : index
    %320 = vector.load %arg17[%c0_135, %c1_136, %c0_137, %c0_138] : memref<1x2x16x32xf32, #tpu.memory_space<vmem>>, vector<1x1x16x32xf32>
    %321 = vector.shape_cast %320 : vector<1x1x16x32xf32> to vector<1x16x32xf32>
    %322 = vector.shape_cast %319 : vector<1x16x32xf32> to vector<1x1x16x32xf32>
    tpu.vector_store %arg17[%c0_135, %c1_136, %c0_137, %c0_138], %322 {strides = array<i32>} : memref<1x2x16x32xf32, #tpu.memory_space<vmem>>, vector<1x1x16x32xf32>,
    return
  }
  func.func @transform_0(%arg0: i32) -> (i32, i32, i32) {
    %c0_i32 = arith.constant 0 : i32
    %c0_i32_0 = arith.constant 0 : i32
    %c0_i32_1 = arith.constant 0 : i32
    return %arg0, %c0_i32, %c0_i32_0 : i32, i32, i32
  }
  func.func @transform_1(%arg0: i32) -> (i32, i32) {
    %c0_i32 = arith.constant 0 : i32
    %c0_i32_0 = arith.constant 0 : i32
    %c0_i32_1 = arith.constant 0 : i32
    return %c0_i32, %c0_i32_0 : i32, i32
  }
  func.func @transform_2(%arg0: i32) -> (i32, i32) {
    %c0_i32 = arith.constant 0 : i32
    %c0_i32_0 = arith.constant 0 : i32
    %c0_i32_1 = arith.constant 0 : i32
    return %c0_i32, %c0_i32_0 : i32, i32
  }
  func.func @transform_3(%arg0: i32) -> (i32, i32) {
    %c0_i32 = arith.constant 0 : i32
    %c0_i32_0 = arith.constant 0 : i32
    %c0_i32_1 = arith.constant 0 : i32
    return %c0_i32, %c0_i32_0 : i32, i32
  }
  func.func @transform_4(%arg0: i32) -> (i32, i32, i32) {
    %c0_i32 = arith.constant 0 : i32
    %c0_i32_0 = arith.constant 0 : i32
    %c0_i32_1 = arith.constant 0 : i32
    %c0_i32_2 = arith.constant 0 : i32
    return %c0_i32, %c0_i32_0, %c0_i32_1 : i32, i32, i32
  }
  func.func @transform_5(%arg0: i32) -> (i32, i32, i32) {
    %c0_i32 = arith.constant 0 : i32
    %c0_i32_0 = arith.constant 0 : i32
    %c0_i32_1 = arith.constant 0 : i32
    %c0_i32_2 = arith.constant 0 : i32
    return %c0_i32, %c0_i32_0, %c0_i32_1 : i32, i32, i32
  }
  func.func @transform_6(%arg0: i32) -> (i32, i32, i32) {
    %c0_i32 = arith.constant 0 : i32
    %c0_i32_0 = arith.constant 0 : i32
    %c0_i32_1 = arith.constant 0 : i32
    %c0_i32_2 = arith.constant 0 : i32
    return %c0_i32, %c0_i32_0, %c0_i32_1 : i32, i32, i32
  }
  func.func @transform_7(%arg0: i32) -> (i32, i32, i32) {
    %c0_i32 = arith.constant 0 : i32
    %c0_i32_0 = arith.constant 0 : i32
    %c0_i32_1 = arith.constant 0 : i32
    %c0_i32_2 = arith.constant 0 : i32
    return %c0_i32, %c0_i32_0, %c0_i32_1 : i32, i32, i32
  }
  func.func @transform_8(%arg0: i32) -> (i32, i32, i32) {
    %c0_i32 = arith.constant 0 : i32
    %c0_i32_0 = arith.constant 0 : i32
    %c0_i32_1 = arith.constant 0 : i32
    %c0_i32_2 = arith.constant 0 : i32
    return %c0_i32, %c0_i32_0, %c0_i32_1 : i32, i32, i32
  }
  func.func @transform_9(%arg0: i32) -> (i32, i32, i32) {
    %c0_i32 = arith.constant 0 : i32
    %c0_i32_0 = arith.constant 0 : i32
    %c0_i32_1 = arith.constant 0 : i32
    %c0_i32_2 = arith.constant 0 : i32
    return %c0_i32, %c0_i32_0, %c0_i32_1 : i32, i32, i32
  }
  func.func @transform_10(%arg0: i32) -> (i32, i32, i32) {
    %c0_i32 = arith.constant 0 : i32
    %c0_i32_0 = arith.constant 0 : i32
    %c0_i32_1 = arith.constant 0 : i32
    %c0_i32_2 = arith.constant 0 : i32
    return %c0_i32, %c0_i32_0, %c0_i32_1 : i32, i32, i32
  }
  func.func @transform_11(%arg0: i32) -> (i32, i32, i32) {
    %c0_i32 = arith.constant 0 : i32
    %c0_i32_0 = arith.constant 0 : i32
    %c0_i32_1 = arith.constant 0 : i32
    %c0_i32_2 = arith.constant 0 : i32
    return %c0_i32, %c0_i32_0, %c0_i32_1 : i32, i32, i32
  }
  func.func @transform_12(%arg0: i32) -> (i32, i32, i32) {
    %c0_i32 = arith.constant 0 : i32
    %c0_i32_0 = arith.constant 0 : i32
    %c0_i32_1 = arith.constant 0 : i32
    %c0_i32_2 = arith.constant 0 : i32
    return %c0_i32, %c0_i32_0, %c0_i32_1 : i32, i32, i32
  }
  func.func @transform_13(%arg0: i32) -> (i32, i32, i32) {
    %c0_i32 = arith.constant 0 : i32
    %c0_i32_0 = arith.constant 0 : i32
    %c0_i32_1 = arith.constant 0 : i32
    %c0_i32_2 = arith.constant 0 : i32
    return %c0_i32, %c0_i32_0, %c0_i32_1 : i32, i32, i32
  }
  func.func @transform_14(%arg0: i32) -> (i32, i32, i32) {
    %c0_i32 = arith.constant 0 : i32
    %c0_i32_0 = arith.constant 0 : i32
    %c0_i32_1 = arith.constant 0 : i32
    %c0_i32_2 = arith.constant 0 : i32
    return %c0_i32, %c0_i32_0, %c0_i32_1 : i32, i32, i32
  }
  func.func @transform_15(%arg0: i32) -> (i32, i32, i32) {
    %c0_i32 = arith.constant 0 : i32
    %c0_i32_0 = arith.constant 0 : i32
    %c0_i32_1 = arith.constant 0 : i32
    %c0_i32_2 = arith.constant 0 : i32
    return %c0_i32, %c0_i32_0, %c0_i32_1 : i32, i32, i32
  }
  func.func @transform_16(%arg0: i32) -> (i32, i32, i32, i32) {
    %c0_i32 = arith.constant 0 : i32
    %c0_i32_0 = arith.constant 0 : i32
    %c0_i32_1 = arith.constant 0 : i32
    %c0_i32_2 = arith.constant 0 : i32
    return %arg0, %c0_i32, %c0_i32_0, %c0_i32_1 : i32, i32, i32, i32
  }
}

</mosaic_0001>

<llo_original>
// kernel: tpu_custom_call.1
$region0: #{tpu_custom_call.1}
  #allocation0 [shape = 'u32[]', space=smem, size = 0x4, offset = 0x4, fixed_abs, tag = 'smem constant byte address 0x4 - core index']
  #allocation1 [shape = 'u32[144,128]{1,0:T(1,128)}', space=vmem, size = 0x12000, scoped, tag = 'internal scratch']
  %s0 = inlined_call_operand.vmem [shape: bf16[2,16,128], index: 0, kind: input, shape index: {}]
  %s1 = inlined_call_operand.vmem [shape: bf16[128,32], index: 1, kind: input, shape index: {}]
  %s2 = inlined_call_operand.vmem [shape: f32[1,32], index: 2, kind: input, shape index: {}]
  %s3 = inlined_call_operand.vmem [shape: f32[16,32], index: 3, kind: input, shape index: {}]
  %s4 = inlined_call_operand.vmem [shape: f32[2,1,32], index: 4, kind: input, shape index: {}]
  %s5 = inlined_call_operand.vmem [shape: f32[2,1,32], index: 5, kind: input, shape index: {}]
  %s6 = inlined_call_operand.vmem [shape: bf16[2,32,96], index: 6, kind: input, shape index: {}]
  %s7 = inlined_call_operand.vmem [shape: f32[2,1,96], index: 7, kind: input, shape index: {}]
  %s8 = inlined_call_operand.vmem [shape: bf16[2,32,32], index: 8, kind: input, shape index: {}]
  %s9 = inlined_call_operand.vmem [shape: f32[2,1,32], index: 9, kind: input, shape index: {}]
  %s10 = inlined_call_operand.vmem [shape: f32[2,1,32], index: 10, kind: input, shape index: {}]
  %s11 = inlined_call_operand.vmem [shape: f32[2,1,32], index: 11, kind: input, shape index: {}]
  %s12 = inlined_call_operand.vmem [shape: bf16[2,32,64], index: 12, kind: input, shape index: {}]
  %s13 = inlined_call_operand.vmem [shape: f32[2,1,64], index: 13, kind: input, shape index: {}]
  %s14 = inlined_call_operand.vmem [shape: bf16[2,64,32], index: 14, kind: input, shape index: {}]
  %s15 = inlined_call_operand.vmem [shape: f32[2,1,32], index: 15, kind: input, shape index: {}]
  %s16 = inlined_call_operand.hbm [shape: f32[2,2,16,32], index: 16, kind: output, shape index: {}]
  %s17 = sld [smem:[#allocation0]]
  $region97: #{tpu_custom_call.1} parent=0
    _
  %s19 = ssub.s32 1, %s17
  %s20 = scalar_select 0, %s19, %s17
  $region1: #{tpu_custom_call.1} parent=0
    #allocation2 [shape = 'u8[32768]{0}', space=vmem, size = 0x8000, scoped, tag = 'output window, operand 0']
    #allocation3 [shape = 's32[2]{0}', space=sflag, size = 0x8, scoped, tag = 'scoped memory for tpu_custom_call.1']
    %21 = vsyncpa [#allocation3], 0
    %s22 = scalar_lea.sflag [#allocation3], 1
    %23 = vsyncpa %s22, 0
    loop: start=0, step=1, limit=4
    $region2: #{tpu_custom_call.1} parent=1 // loop_pre_header
      _
    $region3: #{tpu_custom_call.1} parent=1 // loop_header
      %s25 = sphi 0, %s29
      %p26 = scmp.ge.s32.totalorder %s25, 4
      %s35 = sphi 0, %s37
      %s38 = sphi 0, %s35
      %s39 = sphi 0, %s38
      %s55 = sphi 0, %s39
      %s59 = sphi 0, %s59
      %s61 = sphi 0, %s59
      %s62 = sphi 0, %s61
      %s76 = sphi 0, %s62
      %s80 = sphi 0, %s80
      %s82 = sphi 0, %s80
      %s83 = sphi 0, %s82
      %s97 = sphi 0, %s83
      %s101 = sphi 0, %s101
      %s103 = sphi 0, %s101
      %s104 = sphi 0, %s103
      %s118 = sphi 0, %s104
      %s122 = sphi 0, %s122
      %s124 = sphi 0, %s122
      %s125 = sphi 0, %s124
      %s139 = sphi 0, %s125
      %s143 = sphi 0, %s143
      %s145 = sphi 0, %s143
      %s146 = sphi 0, %s145
      %s160 = sphi 0, %s146
      %s164 = sphi 0, %s164
      %s166 = sphi 0, %s164
      %s167 = sphi 0, %s166
      %s181 = sphi 0, %s167
      %s185 = sphi 0, %s185
      %s187 = sphi 0, %s185
      %s188 = sphi 0, %s187
      %s202 = sphi 0, %s188
      %s206 = sphi 0, %s206
      %s208 = sphi 0, %s206
      %s209 = sphi 0, %s208
      %s223 = sphi 0, %s209
      %s227 = sphi 0, %s227
      %s229 = sphi 0, %s227
      %s230 = sphi 0, %s229
      %s244 = sphi 0, %s230
      %s248 = sphi 0, %s248
      %s250 = sphi 0, %s248
      %s251 = sphi 0, %s250
      %s265 = sphi 0, %s251
      %s269 = sphi 0, %s269
      %s271 = sphi 0, %s269
      %s272 = sphi 0, %s271
      %s286 = sphi 0, %s272
      %s290 = sphi 0, %s290
      %s292 = sphi 0, %s290
      %s293 = sphi 0, %s292
      %s307 = sphi 0, %s293
      %s311 = sphi 0, %s311
      %s313 = sphi 0, %s311
      %s314 = sphi 0, %s313
      %s328 = sphi 0, %s314
      %s332 = sphi 0, %s332
      %s334 = sphi 0, %s332
      %s335 = sphi 0, %s334
      %s349 = sphi 0, %s335
      %s353 = sphi 0, %s353
      %s355 = sphi 0, %s353
      %s356 = sphi 0, %s355
      %s370 = sphi 0, %s356
      %s376 = sphi 0, %s378
      %s379 = sphi 0, %s376
      %s380 = sphi 0, %s379
      %s396 = sphi 0, %s380
    $region4: #{tpu_custom_call.1} parent=1 // loop_header_branch
      %28 = sbr.rel (%p26) target = $region8
    $region5: #{tpu_custom_call.1} parent=1 // loop_body
      %s30 = ssub.s32 %s25, 1
      %s31 = ssub.s32 %s25, 2
      %s32 = sadd.s32 %s25, 1
      %s33 = ssub.s32 %s25, %s32
      %p34 = scmp.eq.s32.totalorder %s33, 0
      %s36 = sadd.s32 %s35, 1
      %s37 = scalar_select %p34, %s35, %s36
      %p40 = pneg %p34
      %p41 = scmp.eq.s32.totalorder %s25, 1
      %p42 = por %p40, %p41
      %p43 = scmp.ne.s32.totalorder %s35, %s38
      %p44 = scmp.eq.s32.totalorder %s25, 0
      %p45 = por %p43, %p44
      %p46 = scmp.ne.s32.totalorder %s35, %s38
      %p47 = scmp.eq.s32.totalorder %s30, 1
      %p48 = por %p46, %p47
      %p49 = scmp.ne.s32.totalorder %s38, %s39
      %p50 = scmp.eq.s32.totalorder %s30, 0
      %p51 = por %p49, %p50
      %p52 = scmp.ne.s32.totalorder %s38, %s39
      %p53 = scmp.eq.s32.totalorder %s31, 1
      %p54 = por %p52, %p53
      %p56 = scmp.ne.s32.totalorder %s39, %s55
      %p57 = scmp.eq.s32.totalorder %s31, 0
      %p58 = por %p56, %p57
      %s60 = sadd.s32 %s59, 1
      %p63 = scmp.eq.s32.totalorder %s25, 1
      %p64 = scmp.ne.s32.totalorder %s59, %s61
      %p65 = scmp.eq.s32.totalorder %s25, 0
      %p66 = por %p64, %p65
      %p67 = scmp.ne.s32.totalorder %s59, %s61
      %p68 = scmp.eq.s32.totalorder %s30, 1
      %p69 = por %p67, %p68
      %p70 = scmp.ne.s32.totalorder %s61, %s62
      %p71 = scmp.eq.s32.totalorder %s30, 0
      %p72 = por %p70, %p71
      %p73 = scmp.ne.s32.totalorder %s61, %s62
      %p74 = scmp.eq.s32.totalorder %s31, 1
      %p75 = por %p73, %p74
      %p77 = scmp.ne.s32.totalorder %s62, %s76
      %p78 = scmp.eq.s32.totalorder %s31, 0
      %p79 = por %p77, %p78
      %s81 = sadd.s32 %s80, 1
      %p84 = scmp.eq.s32.totalorder %s25, 1
      %p85 = scmp.ne.s32.totalorder %s80, %s82
      %p86 = scmp.eq.s32.totalorder %s25, 0
      %p87 = por %p85, %p86
      %p88 = scmp.ne.s32.totalorder %s80, %s82
      %p89 = scmp.eq.s32.totalorder %s30, 1
      %p90 = por %p88, %p89
      %p91 = scmp.ne.s32.totalorder %s82, %s83
      %p92 = scmp.eq.s32.totalorder %s30, 0
      %p93 = por %p91, %p92
      %p94 = scmp.ne.s32.totalorder %s82, %s83
      %p95 = scmp.eq.s32.totalorder %s31, 1
      %p96 = por %p94, %p95
      %p98 = scmp.ne.s32.totalorder %s83, %s97
      %p99 = scmp.eq.s32.totalorder %s31, 0
      %p100 = por %p98, %p99
      %s102 = sadd.s32 %s101, 1
      %p105 = scmp.eq.s32.totalorder %s25, 1
      %p106 = scmp.ne.s32.totalorder %s101, %s103
      %p107 = scmp.eq.s32.totalorder %s25, 0
      %p108 = por %p106, %p107
      %p109 = scmp.ne.s32.totalorder %s101, %s103
      %p110 = scmp.eq.s32.totalorder %s30, 1
      %p111 = por %p109, %p110
      %p112 = scmp.ne.s32.totalorder %s103, %s104
      %p113 = scmp.eq.s32.totalorder %s30, 0
      %p114 = por %p112, %p113
      %p115 = scmp.ne.s32.totalorder %s103, %s104
      %p116 = scmp.eq.s32.totalorder %s31, 1
      %p117 = por %p115, %p116
      %p119 = scmp.ne.s32.totalorder %s104, %s118
      %p120 = scmp.eq.s32.totalorder %s31, 0
      %p121 = por %p119, %p120
      %s123 = sadd.s32 %s122, 1
      %p126 = scmp.eq.s32.totalorder %s25, 1
      %p127 = scmp.ne.s32.totalorder %s122, %s124
      %p128 = scmp.eq.s32.totalorder %s25, 0
      %p129 = por %p127, %p128
      %p130 = scmp.ne.s32.totalorder %s122, %s124
      %p131 = scmp.eq.s32.totalorder %s30, 1
      %p132 = por %p130, %p131
      %p133 = scmp.ne.s32.totalorder %s124, %s125
      %p134 = scmp.eq.s32.totalorder %s30, 0
      %p135 = por %p133, %p134
      %p136 = scmp.ne.s32.totalorder %s124, %s125
      %p137 = scmp.eq.s32.totalorder %s31, 1
      %p138 = por %p136, %p137
      %p140 = scmp.ne.s32.totalorder %s125, %s139
      %p141 = scmp.eq.s32.totalorder %s31, 0
      %p142 = por %p140, %p141
      %s144 = sadd.s32 %s143, 1
      %p147 = scmp.eq.s32.totalorder %s25, 1
      %p148 = scmp.ne.s32.totalorder %s143, %s145
      %p149 = scmp.eq.s32.totalorder %s25, 0
      %p150 = por %p148, %p149
      %p151 = scmp.ne.s32.totalorder %s143, %s145
      %p152 = scmp.eq.s32.totalorder %s30, 1
      %p153 = por %p151, %p152
      %p154 = scmp.ne.s32.totalorder %s145, %s146
      %p155 = scmp.eq.s32.totalorder %s30, 0
      %p156 = por %p154, %p155
      %p157 = scmp.ne.s32.totalorder %s145, %s146
      %p158 = scmp.eq.s32.totalorder %s31, 1
      %p159 = por %p157, %p158
      %p161 = scmp.ne.s32.totalorder %s146, %s160
      %p162 = scmp.eq.s32.totalorder %s31, 0
      %p163 = por %p161, %p162
      %s165 = sadd.s32 %s164, 1
      %p168 = scmp.eq.s32.totalorder %s25, 1
      %p169 = scmp.ne.s32.totalorder %s164, %s166
      %p170 = scmp.eq.s32.totalorder %s25, 0
      %p171 = por %p169, %p170
      %p172 = scmp.ne.s32.totalorder %s164, %s166
      %p173 = scmp.eq.s32.totalorder %s30, 1
      %p174 = por %p172, %p173
      %p175 = scmp.ne.s32.totalorder %s166, %s167
      %p176 = scmp.eq.s32.totalorder %s30, 0
      %p177 = por %p175, %p176
      %p178 = scmp.ne.s32.totalorder %s166, %s167
      %p179 = scmp.eq.s32.totalorder %s31, 1
      %p180 = por %p178, %p179
      %p182 = scmp.ne.s32.totalorder %s167, %s181
      %p183 = scmp.eq.s32.totalorder %s31, 0
      %p184 = por %p182, %p183
      %s186 = sadd.s32 %s185, 1
      %p189 = scmp.eq.s32.totalorder %s25, 1
      %p190 = scmp.ne.s32.totalorder %s185, %s187
      %p191 = scmp.eq.s32.totalorder %s25, 0
      %p192 = por %p190, %p191
      %p193 = scmp.ne.s32.totalorder %s185, %s187
      %p194 = scmp.eq.s32.totalorder %s30, 1
      %p195 = por %p193, %p194
      %p196 = scmp.ne.s32.totalorder %s187, %s188
      %p197 = scmp.eq.s32.totalorder %s30, 0
      %p198 = por %p196, %p197
      %p199 = scmp.ne.s32.totalorder %s187, %s188
      %p200 = scmp.eq.s32.totalorder %s31, 1
      %p201 = por %p199, %p200
      %p203 = scmp.ne.s32.totalorder %s188, %s202
      %p204 = scmp.eq.s32.totalorder %s31, 0
      %p205 = por %p203, %p204
      %s207 = sadd.s32 %s206, 1
      %p210 = scmp.eq.s32.totalorder %s25, 1
      %p211 = scmp.ne.s32.totalorder %s206, %s208
      %p212 = scmp.eq.s32.totalorder %s25, 0
      %p213 = por %p211, %p212
      %p214 = scmp.ne.s32.totalorder %s206, %s208
      %p215 = scmp.eq.s32.totalorder %s30, 1
      %p216 = por %p214, %p215
      %p217 = scmp.ne.s32.totalorder %s208, %s209
      %p218 = scmp.eq.s32.totalorder %s30, 0
      %p219 = por %p217, %p218
      %p220 = scmp.ne.s32.totalorder %s208, %s209
      %p221 = scmp.eq.s32.totalorder %s31, 1
      %p222 = por %p220, %p221
      %p224 = scmp.ne.s32.totalorder %s209, %s223
      %p225 = scmp.eq.s32.totalorder %s31, 0
      %p226 = por %p224, %p225
      %s228 = sadd.s32 %s227, 1
      %p231 = scmp.eq.s32.totalorder %s25, 1
      %p232 = scmp.ne.s32.totalorder %s227, %s229
      %p233 = scmp.eq.s32.totalorder %s25, 0
      %p234 = por %p232, %p233
      %p235 = scmp.ne.s32.totalorder %s227, %s229
      %p236 = scmp.eq.s32.totalorder %s30, 1
      %p237 = por %p235, %p236
      %p238 = scmp.ne.s32.totalorder %s229, %s230
      %p239 = scmp.eq.s32.totalorder %s30, 0
      %p240 = por %p238, %p239
      %p241 = scmp.ne.s32.totalorder %s229, %s230
      %p242 = scmp.eq.s32.totalorder %s31, 1
      %p243 = por %p241, %p242
      %p245 = scmp.ne.s32.totalorder %s230, %s244
      %p246 = scmp.eq.s32.totalorder %s31, 0
      %p247 = por %p245, %p246
      %s249 = sadd.s32 %s248, 1
      %p252 = scmp.eq.s32.totalorder %s25, 1
      %p253 = scmp.ne.s32.totalorder %s248, %s250
      %p254 = scmp.eq.s32.totalorder %s25, 0
      %p255 = por %p253, %p254
      %p256 = scmp.ne.s32.totalorder %s248, %s250
      %p257 = scmp.eq.s32.totalorder %s30, 1
      %p258 = por %p256, %p257
      %p259 = scmp.ne.s32.totalorder %s250, %s251
      %p260 = scmp.eq.s32.totalorder %s30, 0
      %p261 = por %p259, %p260
      %p262 = scmp.ne.s32.totalorder %s250, %s251
      %p263 = scmp.eq.s32.totalorder %s31, 1
      %p264 = por %p262, %p263
      %p266 = scmp.ne.s32.totalorder %s251, %s265
      %p267 = scmp.eq.s32.totalorder %s31, 0
      %p268 = por %p266, %p267
      %s270 = sadd.s32 %s269, 1
      %p273 = scmp.eq.s32.totalorder %s25, 1
      %p274 = scmp.ne.s32.totalorder %s269, %s271
      %p275 = scmp.eq.s32.totalorder %s25, 0
      %p276 = por %p274, %p275
      %p277 = scmp.ne.s32.totalorder %s269, %s271
      %p278 = scmp.eq.s32.totalorder %s30, 1
      %p279 = por %p277, %p278
      %p280 = scmp.ne.s32.totalorder %s271, %s272
      %p281 = scmp.eq.s32.totalorder %s30, 0
      %p282 = por %p280, %p281
      %p283 = scmp.ne.s32.totalorder %s271, %s272
      %p284 = scmp.eq.s32.totalorder %s31, 1
      %p285 = por %p283, %p284
      %p287 = scmp.ne.s32.totalorder %s272, %s286
      %p288 = scmp.eq.s32.totalorder %s31, 0
      %p289 = por %p287, %p288
      %s291 = sadd.s32 %s290, 1
      %p294 = scmp.eq.s32.totalorder %s25, 1
      %p295 = scmp.ne.s32.totalorder %s290, %s292
      %p296 = scmp.eq.s32.totalorder %s25, 0
      %p297 = por %p295, %p296
      %p298 = scmp.ne.s32.totalorder %s290, %s292
      %p299 = scmp.eq.s32.totalorder %s30, 1
      %p300 = por %p298, %p299
      %p301 = scmp.ne.s32.totalorder %s292, %s293
      %p302 = scmp.eq.s32.totalorder %s30, 0
      %p303 = por %p301, %p302
      %p304 = scmp.ne.s32.totalorder %s292, %s293
      %p305 = scmp.eq.s32.totalorder %s31, 1
      %p306 = por %p304, %p305
      %p308 = scmp.ne.s32.totalorder %s293, %s307
      %p309 = scmp.eq.s32.totalorder %s31, 0
      %p310 = por %p308, %p309
      %s312 = sadd.s32 %s311, 1
      %p315 = scmp.eq.s32.totalorder %s25, 1
      %p316 = scmp.ne.s32.totalorder %s311, %s313
      %p317 = scmp.eq.s32.totalorder %s25, 0
      %p318 = por %p316, %p317
      %p319 = scmp.ne.s32.totalorder %s311, %s313
      %p320 = scmp.eq.s32.totalorder %s30, 1
      %p321 = por %p319, %p320
      %p322 = scmp.ne.s32.totalorder %s313, %s314
      %p323 = scmp.eq.s32.totalorder %s30, 0
      %p324 = por %p322, %p323
      %p325 = scmp.ne.s32.totalorder %s313, %s314
      %p326 = scmp.eq.s32.totalorder %s31, 1
      %p327 = por %p325, %p326
      %p329 = scmp.ne.s32.totalorder %s314, %s328
      %p330 = scmp.eq.s32.totalorder %s31, 0
      %p331 = por %p329, %p330
      %s333 = sadd.s32 %s332, 1
      %p336 = scmp.eq.s32.totalorder %s25, 1
      %p337 = scmp.ne.s32.totalorder %s332, %s334
      %p338 = scmp.eq.s32.totalorder %s25, 0
      %p339 = por %p337, %p338
      %p340 = scmp.ne.s32.totalorder %s332, %s334
      %p341 = scmp.eq.s32.totalorder %s30, 1
      %p342 = por %p340, %p341
      %p343 = scmp.ne.s32.totalorder %s334, %s335
      %p344 = scmp.eq.s32.totalorder %s30, 0
      %p345 = por %p343, %p344
      %p346 = scmp.ne.s32.totalorder %s334, %s335
      %p347 = scmp.eq.s32.totalorder %s31, 1
      %p348 = por %p346, %p347
      %p350 = scmp.ne.s32.totalorder %s335, %s349
      %p351 = scmp.eq.s32.totalorder %s31, 0
      %p352 = por %p350, %p351
      %s354 = sadd.s32 %s353, 1
      %p357 = scmp.eq.s32.totalorder %s25, 1
      %p358 = scmp.ne.s32.totalorder %s353, %s355
      %p359 = scmp.eq.s32.totalorder %s25, 0
      %p360 = por %p358, %p359
      %p361 = scmp.ne.s32.totalorder %s353, %s355
      %p362 = scmp.eq.s32.totalorder %s30, 1
      %p363 = por %p361, %p362
      %p364 = scmp.ne.s32.totalorder %s355, %s356
      %p365 = scmp.eq.s32.totalorder %s30, 0
      %p366 = por %p364, %p365
      %p367 = scmp.ne.s32.totalorder %s355, %s356
      %p368 = scmp.eq.s32.totalorder %s31, 1
      %p369 = por %p367, %p368
      %p371 = scmp.ne.s32.totalorder %s356, %s370
      %p372 = scmp.eq.s32.totalorder %s31, 0
      %p373 = por %p371, %p372
      %s374 = ssub.s32 %s25, %s32
      %p375 = scmp.eq.s32.totalorder %s374, 0
      %s377 = sadd.s32 %s376, 1
      %s378 = scalar_select %p375, %s376, %s377
      %p381 = pneg %p375
      %p382 = scmp.eq.s32.totalorder %s25, 1
      %p383 = por %p381, %p382
      %p384 = scmp.ne.s32.totalorder %s376, %s379
      %p385 = scmp.eq.s32.totalorder %s25, 0
      %p386 = por %p384, %p385
      %p387 = scmp.ne.s32.totalorder %s376, %s379
      %p388 = scmp.eq.s32.totalorder %s30, 1
      %p389 = por %p387, %p388
      %p390 = scmp.ne.s32.totalorder %s379, %s380
      %p391 = scmp.eq.s32.totalorder %s30, 0
      %p392 = por %p390, %p391
      %p393 = scmp.ne.s32.totalorder %s379, %s380
      %p394 = scmp.eq.s32.totalorder %s31, 1
      %p395 = por %p393, %p394
      %p397 = scmp.ne.s32.totalorder %s380, %s396
      %p398 = scmp.eq.s32.totalorder %s31, 0
      %p399 = por %p397, %p398
      %p400 = scmp.le.s32.totalorder 1, %s25
      %p401 = scmp.lt.s32.totalorder %s25, 3
      %p402 = pnand %p400, %p401
      %p403 = pneg %p402
      // Predicated region
      $region9: #{tpu_custom_call.1} parent=5 // pred_check
        _
      $region10: #{tpu_custom_call.1} parent=5 // pred_check_branch
        %405 = sbr.rel (%p402) target = $region12
      $region11: #{tpu_custom_call.1} parent=5 // pred_region
        %s406 = ssub.s32 %s25, 1
        // Predicated region
        $region13: #{tpu_custom_call.1} parent=11 // pred_check
          %p407 = pneg %p72
        $region14: #{tpu_custom_call.1} parent=11 // pred_check_branch
          %409 = sbr.rel (%p407) target = $region16
        $region15: #{tpu_custom_call.1} parent=11 // pred_region
          _
        $region16: #{tpu_custom_call.1} parent=11 // pred_fallthru
          _
        // Predicated region
        $region17: #{tpu_custom_call.1} parent=11 // pred_check
          %p410 = pneg %p93
        $region18: #{tpu_custom_call.1} parent=11 // pred_check_branch
          %412 = sbr.rel (%p410) target = $region20
        $region19: #{tpu_custom_call.1} parent=11 // pred_region
          _
        $region20: #{tpu_custom_call.1} parent=11 // pred_fallthru
          _
        // Predicated region
        $region21: #{tpu_custom_call.1} parent=11 // pred_check
          %p413 = pneg %p114
        $region22: #{tpu_custom_call.1} parent=11 // pred_check_branch
          %415 = sbr.rel (%p413) target = $region24
        $region23: #{tpu_custom_call.1} parent=11 // pred_region
          _
        $region24: #{tpu_custom_call.1} parent=11 // pred_fallthru
          _
        // Predicated region
        $region25: #{tpu_custom_call.1} parent=11 // pred_check
          %p416 = pneg %p135
        $region26: #{tpu_custom_call.1} parent=11 // pred_check_branch
          %418 = sbr.rel (%p416) target = $region28
        $region27: #{tpu_custom_call.1} parent=11 // pred_region
          _
        $region28: #{tpu_custom_call.1} parent=11 // pred_fallthru
          _
        // Predicated region
        $region29: #{tpu_custom_call.1} parent=11 // pred_check
          %p419 = pneg %p156
        $region30: #{tpu_custom_call.1} parent=11 // pred_check_branch
          %421 = sbr.rel (%p419) target = $region32
        $region31: #{tpu_custom_call.1} parent=11 // pred_region
          _
        $region32: #{tpu_custom_call.1} parent=11 // pred_fallthru
          _
        // Predicated region
        $region33: #{tpu_custom_call.1} parent=11 // pred_check
          %p422 = pneg %p177
        $region34: #{tpu_custom_call.1} parent=11 // pred_check_branch
          %424 = sbr.rel (%p422) target = $region36
        $region35: #{tpu_custom_call.1} parent=11 // pred_region
          _
        $region36: #{tpu_custom_call.1} parent=11 // pred_fallthru
          _
        // Predicated region
        $region37: #{tpu_custom_call.1} parent=11 // pred_check
          %p425 = pneg %p198
        $region38: #{tpu_custom_call.1} parent=11 // pred_check_branch
          %427 = sbr.rel (%p425) target = $region40
        $region39: #{tpu_custom_call.1} parent=11 // pred_region
          _
        $region40: #{tpu_custom_call.1} parent=11 // pred_fallthru
          _
        // Predicated region
        $region41: #{tpu_custom_call.1} parent=11 // pred_check
          %p428 = pneg %p219
        $region42: #{tpu_custom_call.1} parent=11 // pred_check_branch
          %430 = sbr.rel (%p428) target = $region44
        $region43: #{tpu_custom_call.1} parent=11 // pred_region
          _
        $region44: #{tpu_custom_call.1} parent=11 // pred_fallthru
          _
        // Predicated region
        $region45: #{tpu_custom_call.1} parent=11 // pred_check
          %p431 = pneg %p240
        $region46: #{tpu_custom_call.1} parent=11 // pred_check_branch
          %433 = sbr.rel (%p431) target = $region48
        $region47: #{tpu_custom_call.1} parent=11 // pred_region
          _
        $region48: #{tpu_custom_call.1} parent=11 // pred_fallthru
          _
        // Predicated region
        $region49: #{tpu_custom_call.1} parent=11 // pred_check
          %p434 = pneg %p261
        $region50: #{tpu_custom_call.1} parent=11 // pred_check_branch
          %436 = sbr.rel (%p434) target = $region52
        $region51: #{tpu_custom_call.1} parent=11 // pred_region
          _
        $region52: #{tpu_custom_call.1} parent=11 // pred_fallthru
          _
        // Predicated region
        $region53: #{tpu_custom_call.1} parent=11 // pred_check
          %p437 = pneg %p282
        $region54: #{tpu_custom_call.1} parent=11 // pred_check_branch
          %439 = sbr.rel (%p437) target = $region56
        $region55: #{tpu_custom_call.1} parent=11 // pred_region
          _
        $region56: #{tpu_custom_call.1} parent=11 // pred_fallthru
          _
        // Predicated region
        $region57: #{tpu_custom_call.1} parent=11 // pred_check
          %p440 = pneg %p303
        $region58: #{tpu_custom_call.1} parent=11 // pred_check_branch
          %442 = sbr.rel (%p440) target = $region60
        $region59: #{tpu_custom_call.1} parent=11 // pred_region
          _
        $region60: #{tpu_custom_call.1} parent=11 // pred_fallthru
          _
        // Predicated region
        $region61: #{tpu_custom_call.1} parent=11 // pred_check
          %p443 = pneg %p324
        $region62: #{tpu_custom_call.1} parent=11 // pred_check_branch
          %445 = sbr.rel (%p443) target = $region64
        $region63: #{tpu_custom_call.1} parent=11 // pred_region
          _
        $region64: #{tpu_custom_call.1} parent=11 // pred_fallthru
          _
        // Predicated region
        $region65: #{tpu_custom_call.1} parent=11 // pred_check
          %p446 = pneg %p345
        $region66: #{tpu_custom_call.1} parent=11 // pred_check_branch
          %448 = sbr.rel (%p446) target = $region68
        $region67: #{tpu_custom_call.1} parent=11 // pred_region
          _
        $region68: #{tpu_custom_call.1} parent=11 // pred_fallthru
          _
        // Predicated region
        $region69: #{tpu_custom_call.1} parent=11 // pred_check
          %p449 = pneg %p366
        $region70: #{tpu_custom_call.1} parent=11 // pred_check_branch
          %451 = sbr.rel (%p449) target = $region72
        $region71: #{tpu_custom_call.1} parent=11 // pred_region
          _
        $region72: #{tpu_custom_call.1} parent=11 // pred_fallthru
          _
      $region12: #{tpu_custom_call.1} parent=5 // pred_fallthru
        _
      %p452 = scmp.lt.s32.totalorder %s25, 2
      // Predicated region
      $region73: #{tpu_custom_call.1} parent=5 // pred_check
        %p453 = pneg %p452
      $region74: #{tpu_custom_call.1} parent=5 // pred_check_branch
        %455 = sbr.rel (%p453) target = $region76
      $region75: #{tpu_custom_call.1} parent=5 // pred_region
        // Predicated region
        $region77: #{tpu_custom_call.1} parent=75 // pred_check
          %p456 = pneg %p45
        $region78: #{tpu_custom_call.1} parent=75 // pred_check_branch
          %458 = sbr.rel (%p456) target = $region80
        $region79: #{tpu_custom_call.1} parent=75 // pred_region
          %p459 = scmp.lt.s32.totalorder %s25, 1
          %s460 = scalar_select %p459, %s25, 1
          %s461 = smul.addr %s460, 2
          %s462 = smul.addr %s461, 4
          %s463 = scalar_lea.vmem %s0, %s462
        $region80: #{tpu_custom_call.1} parent=75 // pred_fallthru
          _
      $region76: #{tpu_custom_call.1} parent=5 // pred_fallthru
        _
      %p464 = scmp.le.s32.totalorder 1, %s25
      %p465 = scmp.lt.s32.totalorder %s25, 3
      %p466 = pnand %p464, %p465
      %p467 = pneg %p466
      // Predicated region
      $region81: #{tpu_custom_call.1} parent=5 // pred_check
        _
      $region82: #{tpu_custom_call.1} parent=5 // pred_check_branch
        %469 = sbr.rel (%p466) target = $region84
      $region83: #{tpu_custom_call.1} parent=5 // pred_region
        %s470 = ssub.s32 %s25, 1
        %p471 = scmp.lt.s32.totalorder %s30, 1
        %s472 = scalar_select %p471, %s30, 1
        %s473 = smul.addr %s472, 2
        %s474 = smul.addr %s473, 4
        %s475 = scalar_lea.vmem %s0, %s474
        %p476 = pneg %p51
        %p477 = pneg %p48
        %p478 = pneg %p72
        %p479 = pneg %p69
        %p480 = pneg %p93
        %p481 = pneg %p90
        %p482 = pneg %p114
        %p483 = pneg %p111
        %p484 = pneg %p135
        %p485 = pneg %p132
        %p486 = pneg %p156
        %p487 = pneg %p153
        %p488 = pneg %p177
        %p489 = pneg %p174
        %p490 = pneg %p198
        %p491 = pneg %p195
        %p492 = pneg %p219
        %p493 = pneg %p216
        %p494 = pneg %p240
        %p495 = pneg %p237
        %p496 = pneg %p261
        %p497 = pneg %p258
        %p498 = pneg %p282
        %p499 = pneg %p279
        %p500 = pneg %p303
        %p501 = pneg %p300
        %p502 = pneg %p324
        %p503 = pneg %p321
        %p504 = pneg %p345
        %p505 = pneg %p342
        %p506 = pneg %p366
        %p507 = pneg %p363
        %p508 = pneg %p392
        %p509 = pneg %p389
        %s510 = sand.u32 %s379, 1
        %s511 = scalar_lea.sflag [#allocation3], %s510
        %s512 = sand.u32 %s379, 1
        %s513 = smul.addr %s512, 32
        %s514 = scalar_lea.vmem [#allocation2], %s513
        %p515 = scmp.lt.s32.totalorder %s30, 1
        %s516 = scalar_select %p515, %s30, 1
        %s517 = smul.addr %s516, 2
        %s518 = smul.addr %s517, 4
        %s519 = scalar_lea.vmem %s0, %s518
        %v521 = vld [vmem:[%s519] sm:$0xf]
        %v522 = vld [vmem:[%s519 + $0x4] sm:$0xf]
        %v523 = vld [vmem:[%s1] sm:$0xf]
        %v524 = vld [vmem:[%s1 + $0x4] sm:$0xf]
        %v525 = vld [vmem:[%s1 + $0x8] sm:$0xf]
        %v526 = vld [vmem:[%s1 + $0xc] sm:$0xf]
        %v527 = vld [vmem:[%s1 + $0x10] sm:$0xf]
        %v528 = vld [vmem:[%s1 + $0x14] sm:$0xf]
        %v529 = vld [vmem:[%s1 + $0x18] sm:$0xf]
        %v530 = vld [vmem:[%s1 + $0x1c] sm:$0xf]
        %v531 = vld [vmem:[%s1 + $0x20] sm:$0xf]
        %v532 = vld [vmem:[%s1 + $0x24] sm:$0xf]
        %v533 = vld [vmem:[%s1 + $0x28] sm:$0xf]
        %v534 = vld [vmem:[%s1 + $0x2c] sm:$0xf]
        %v535 = vld [vmem:[%s1 + $0x30] sm:$0xf]
        %v536 = vld [vmem:[%s1 + $0x34] sm:$0xf]
        %v537 = vld [vmem:[%s1 + $0x38] sm:$0xf]
        %v538 = vld [vmem:[%s1 + $0x3c] sm:$0xf]
        %v539 = vld [vmem:[%s2] sm:$0x1]
        %v541 = vlaneseq
        %v542 = vshrl.u32 %v541, 7
        %v543 = vsub.s32 0, %v542
        %v544 = vrot.slane %v539, %v543
        %v548 = vunpack.c.l.b16 %v521
        %v549 = vunpack.c.l.b16 %v522
        %v550 = vpack.c.b16 %v549, %v548
        %v568 = vunpack.c.l.b16 %v523
        %v569 = vunpack.c.l.b16 %v524
        %v570 = vunpack.c.l.b16 %v525
        %v571 = vunpack.c.l.b16 %v526
        %v572 = vunpack.c.l.b16 %v527
        %v573 = vunpack.c.l.b16 %v528
        %v574 = vunpack.c.l.b16 %v529
        %v575 = vunpack.c.l.b16 %v530
        %v576 = vunpack.c.l.b16 %v531
        %v577 = vunpack.c.l.b16 %v532
        %v578 = vunpack.c.l.b16 %v533
        %v579 = vunpack.c.l.b16 %v534
        %v580 = vunpack.c.l.b16 %v535
        %v581 = vunpack.c.l.b16 %v536
        %v582 = vunpack.c.l.b16 %v537
        %v583 = vunpack.c.l.b16 %v538
        %v584 = vpack.c.b16 %v569, %v568
        %v585 = vpack.c.b16 %v571, %v570
        %v586 = vpack.c.b16 %v573, %v572
        %v587 = vpack.c.b16 %v575, %v574
        %v588 = vpack.c.b16 %v577, %v576
        %v589 = vpack.c.b16 %v579, %v578
        %v590 = vpack.c.b16 %v581, %v580
        %v591 = vpack.c.b16 %v583, %v582
        %600 = vmatprep.subr.bf16.mxu0 0
        %601 = vmatpush1.bf16.msra.mxu0 %v591
        %602 = vmatprep.subr.bf16.mxu0 0
        %603 = vmatpush1.bf16.msra.mxu0 %v590
        %604 = vmatprep.subr.bf16.mxu0 0
        %605 = vmatpush1.bf16.msra.mxu0 %v589
        %606 = vmatprep.subr.bf16.mxu0 0
        %607 = vmatpush1.bf16.msra.mxu0 %v588
        %608 = vmatprep.subr.bf16.mxu0 0
        %609 = vmatpush1.bf16.msra.mxu0 %v587
        %610 = vmatprep.subr.bf16.mxu0 0
        %611 = vmatpush1.bf16.msra.mxu0 %v586
        %612 = vmatprep.subr.bf16.mxu0 0
        %613 = vmatpush1.bf16.msra.mxu0 %v585
        %614 = vmatprep.subr.bf16.mxu0 0
        %615 = vmatpush1.bf16.msra.mxu0 %v584
        %616 = vmatprep.subr.bf16.mxu0 0
        %617 = vmatpush2.bf16.msra.mxu0 0
        %618 = vmatprep.subr.bf16.mxu0 0
        %619 = vmatpush2.bf16.msra.mxu0 0
        %620 = vmatprep.subr.bf16.mxu0 0
        %621 = vmatpush2.bf16.msra.mxu0 0
        %622 = vmatprep.subr.bf16.mxu0 0
        %623 = vmatpush2.bf16.msra.mxu0 0
        %624 = vmatprep.subr.bf16.mxu0 0
        %625 = vmatpush2.bf16.msra.mxu0 0
        %626 = vmatprep.subr.bf16.mxu0 0
        %627 = vmatpush2.bf16.msra.mxu0 0
        %628 = vmatprep.subr.bf16.mxu0 0
        %629 = vmatpush2.bf16.msra.mxu0 0
        %630 = vmatprep.subr.bf16.mxu0 0
        %631 = vmatpush2.bf16.msra.mxu0 0
        %632 = vmatprep.mubr.bf16.mxu0 0
        %633 = vmatmul.mubr.bf16.gmra.mxu0 %v550
        %v634 = vpop.f32.mrf.mxu0
        %v635 = vadd.f32 %v544, %v634
        %v636 = vpop.f32.mrf.mxu0
        %v637 = vpop.f32.mrf.mxu0
        %v638 = vadd.f32 %v544, %v637
        %v639 = vpop.f32.mrf.mxu0
        %640 = vdwg.mxu0
        %v641 = vld [vmem:[%s3] sm:$0xff]
        %v642 = vld [vmem:[%s3 + $0x8] sm:$0xff]
        %v643 = vadd.f32 %v635, %v641
        %v644 = vadd.f32 %v638, %v642
        %v645 = vld [vmem:[%s4] sm:$0x1]
        %v646 = vld [vmem:[%s5] sm:$0x1]
        %vm647 = vcmask 261120
        %v648 = vsel %vm647, %v643, 0.0
        %649 = vadd.xlane.f32.xlu0 %v648
        %v650 = vpop.xlane.xlu0 %649
        %v651 = vsel %vm647, %v644, 0.0
        %652 = vadd.xlane.f32.xlu0 %v651
        %v653 = vpop.xlane.xlu0 %652
        %v654 = vrcp.pop 32.0
        %v655 = vmul.f32 %v650, %v654
        %v656 = vmul.f32 %v653, %v654
        %v657 = vsub.f32 %v643, %v655
        %v658 = vsub.f32 %v644, %v656
        %v659 = vmul.f32 %v657, %v657
        %v660 = vmul.f32 %v658, %v658
        %v661 = vsel %vm647, %v659, 0.0
        %662 = vadd.xlane.f32.xlu0 %v661
        %v663 = vpop.xlane.xlu0 %662
        %v664 = vsel %vm647, %v660, 0.0
        %665 = vadd.xlane.f32.xlu0 %v664
        %v666 = vpop.xlane.xlu0 %665
        %v667 = vmul.f32 %v663, %v654
        %v668 = vmul.f32 %v666, %v654
        %v669 = vadd.f32 %v667, 1e-06
        %v670 = vadd.f32 %v668, 1e-06
        %v671 = vrsqrt.pop %v669
        %v672 = vrsqrt.pop %v670
        %v673 = vmul.f32 %v657, %v671
        %v674 = vmul.f32 %v658, %v672
        %v676 = vlaneseq
        %v677 = vshrl.u32 %v676, 7
        %v678 = vsub.s32 0, %v677
        %v679 = vrot.slane %v645, %v678
        %v681 = vmul.f32 %v673, %v679
        %v682 = vmul.f32 %v674, %v679
        %v684 = vlaneseq
        %v685 = vshrl.u32 %v684, 7
        %v686 = vsub.s32 0, %v685
        %v687 = vrot.slane %v646, %v686
        %v689 = vadd.f32 %v681, %v687
        %v690 = vadd.f32 %v682, %v687
        %v691 = vpack.c.bf16 %v690, %v689
        %v692 = vld [vmem:[%s6] sm:$0xf]
        %v693 = vld [vmem:[%s6 + $0x4] sm:$0xf]
        %v694 = vld [vmem:[%s6 + $0x8] sm:$0xf]
        %v695 = vld [vmem:[%s6 + $0xc] sm:$0xf]
        %v696 = vld [vmem:[%s7] sm:$0x1]
        %v698 = vlaneseq
        %v699 = vshrl.u32 %v698, 7
        %v700 = vsub.s32 0, %v699
        %v701 = vrot.slane %v696, %v700
        %v707 = vunpack.c.l.b16 %v692
        %v708 = vunpack.c.l.b16 %v693
        %v709 = vunpack.c.l.b16 %v694
        %v710 = vunpack.c.l.b16 %v695
        %v711 = vpack.c.b16 %v708, %v707
        %v712 = vpack.c.b16 %v710, %v709
        %v716 = vsel %vm647, %v691, 0
        %718 = vmatprep.subr.bf16.mxu0 0
        %719 = vmatpush1.bf16.msra.mxu0 0
        %720 = vmatprep.subr.bf16.mxu0 0
        %721 = vmatpush1.bf16.msra.mxu0 0
        %722 = vmatprep.subr.bf16.mxu0 0
        %723 = vmatpush1.bf16.msra.mxu0 0
        %724 = vmatprep.subr.bf16.mxu0 0
        %725 = vmatpush1.bf16.msra.mxu0 0
        %726 = vmatprep.subr.bf16.mxu0 0
        %727 = vmatpush1.bf16.msra.mxu0 0
        %728 = vmatprep.subr.bf16.mxu0 0
        %729 = vmatpush1.bf16.msra.mxu0 0
        %730 = vmatprep.subr.bf16.mxu0 0
        %731 = vmatpush1.bf16.msra.mxu0 %v712
        %732 = vmatprep.subr.bf16.mxu0 0
        %733 = vmatpush1.bf16.msra.mxu0 %v711
        %734 = vmatprep.subr.bf16.mxu0 0
        %735 = vmatpush2.bf16.msra.mxu0 0
        %736 = vmatprep.subr.bf16.mxu0 0
        %737 = vmatpush2.bf16.msra.mxu0 0
        %738 = vmatprep.subr.bf16.mxu0 0
        %739 = vmatpush2.bf16.msra.mxu0 0
        %740 = vmatprep.subr.bf16.mxu0 0
        %741 = vmatpush2.bf16.msra.mxu0 0
        %742 = vmatprep.subr.bf16.mxu0 0
        %743 = vmatpush2.bf16.msra.mxu0 0
        %744 = vmatprep.subr.bf16.mxu0 0
        %745 = vmatpush2.bf16.msra.mxu0 0
        %746 = vmatprep.subr.bf16.mxu0 0
        %747 = vmatpush2.bf16.msra.mxu0 0
        %748 = vmatprep.subr.bf16.mxu0 0
        %749 = vmatpush2.bf16.msra.mxu0 0
        %750 = vmatprep.mubr.bf16.mxu0 0
        %751 = vmatmul.mubr.bf16.gmra.mxu0 %v716
        %v752 = vpop.f32.mrf.mxu0
        %v753 = vadd.f32 %v701, %v752
        %v754 = vpop.f32.mrf.mxu0
        %v755 = vpop.f32.mrf.mxu0
        %v756 = vadd.f32 %v701, %v755
        %v757 = vpop.f32.mrf.mxu0
        %758 = vdwg.mxu0
        %v759 = vpack.c.bf16 %v756, %v753
        %761 = vrot.lane.b32.xlu0 %v759, 96
        %v762 = vpop.permute.xlu0 %761
        %vm763 = vcmask 130048
        %v765 = vsel %vm763, %v759, 0
        %v768 = vsel %vm763, %v762, 0
        %770 = vmatprep.subr.bf16.mxu0 0
        %771 = vmatpush1.bf16.xpose.msra.mxu0 0
        %772 = vmatprep.subr.bf16.mxu0 0
        %773 = vmatpush1.bf16.xpose.msra.mxu0 0
        %774 = vmatprep.subr.bf16.mxu0 0
        %775 = vmatpush1.bf16.xpose.msra.mxu0 0
        %776 = vmatprep.subr.bf16.mxu0 0
        %777 = vmatpush1.bf16.xpose.msra.mxu0 0
        %778 = vmatprep.subr.bf16.mxu0 0
        %779 = vmatpush1.bf16.xpose.msra.mxu0 0
        %780 = vmatprep.subr.bf16.mxu0 0
        %781 = vmatpush1.bf16.xpose.msra.mxu0 0
        %782 = vmatprep.subr.bf16.mxu0 0
        %783 = vmatpush1.bf16.xpose.msra.mxu0 0
        %784 = vmatprep.subr.bf16.mxu0 0
        %785 = vmatpush1.bf16.xpose.msra.mxu0 %v768
        %786 = vmatprep.subr.bf16.mxu0 0
        %787 = vmatpush2.bf16.xpose.msra.mxu0 0
        %788 = vmatprep.subr.bf16.mxu0 0
        %789 = vmatpush2.bf16.xpose.msra.mxu0 0
        %790 = vmatprep.subr.bf16.mxu0 0
        %791 = vmatpush2.bf16.xpose.msra.mxu0 0
        %792 = vmatprep.subr.bf16.mxu0 0
        %793 = vmatpush2.bf16.xpose.msra.mxu0 0
        %794 = vmatprep.subr.bf16.mxu0 0
        %795 = vmatpush2.bf16.xpose.msra.mxu0 0
        %796 = vmatprep.subr.bf16.mxu0 0
        %797 = vmatpush2.bf16.xpose.msra.mxu0 0
        %798 = vmatprep.subr.bf16.mxu0 0
        %799 = vmatpush2.bf16.xpose.msra.mxu0 0
        %800 = vmatprep.subr.bf16.mxu0 0
        %801 = vmatpush2.bf16.xpose.msra.mxu0 0
        %802 = vmatprep.mubr.bf16.mxu0 0
        %803 = vmatmul.mubr.bf16.gmra.mxu0 %v765
        %v804 = vpop.f32.mrf.mxu0
        %v805 = vadd.f32 0.0, %v804
        %v806 = vpop.f32.mrf.mxu0
        %v807 = vpop.f32.mrf.mxu0
        %v808 = vadd.f32 0.0, %v807
        %v809 = vpop.f32.mrf.mxu0
        %810 = vdwg.mxu0
        %v811 = vsel %vm763, %v805, -inf
        %812 = vmax.xlane.f32.xlu0 %v811
        %v813 = vpop.xlane.xlu0 %812
        %v814 = vsel %vm763, %v808, -inf
        %815 = vmax.xlane.f32.xlu0 %v814
        %v816 = vpop.xlane.xlu0 %815
        %v817 = vsub.f32 %v805, %v813
        %v818 = vsub.f32 %v808, %v816
        %v819 = vmul.f32 %v817, 1.442695
        %v820 = vpow.pop %v819
        %v821 = vmul.f32 %v818, 1.442695
        %v822 = vpow.pop %v821
        %v823 = vsel %vm763, %v820, 0.0
        %824 = vadd.xlane.f32.xlu0 %v823
        %v825 = vpop.xlane.xlu0 %824
        %v826 = vsel %vm763, %v822, 0.0
        %827 = vadd.xlane.f32.xlu0 %v826
        %v828 = vpop.xlane.xlu0 %827
        %v829 = vrcp.pop %v825
        %v830 = vrcp.pop %v828
        %v831 = vmul.f32 %v820, %v829
        %v832 = vmul.f32 %v822, %v830
        %v833 = vpack.c.bf16 %v832, %v831
        %834 = vrot.lane.b32.xlu0 %v759, 64
        %v835 = vpop.permute.xlu0 %834
        %v838 = vsel %vm763, %v833, 0
        %840 = vmatprep.subr.bf16.mxu0 0
        %841 = vmatpush1.bf16.msra.mxu0 0
        %842 = vmatprep.subr.bf16.mxu0 0
        %843 = vmatpush1.bf16.msra.mxu0 0
        %844 = vmatprep.subr.bf16.mxu0 0
        %845 = vmatpush1.bf16.msra.mxu0 0
        %846 = vmatprep.subr.bf16.mxu0 0
        %847 = vmatpush1.bf16.msra.mxu0 0
        %848 = vmatprep.subr.bf16.mxu0 0
        %849 = vmatpush1.bf16.msra.mxu0 0
        %850 = vmatprep.subr.bf16.mxu0 0
        %851 = vmatpush1.bf16.msra.mxu0 0
        %852 = vmatprep.subr.bf16.mxu0 0
        %853 = vmatpush1.bf16.msra.mxu0 0
        %854 = vmatprep.subr.bf16.mxu0 0
        %855 = vmatpush1.bf16.msra.mxu0 %v835
        %856 = vmatprep.subr.bf16.mxu0 0
        %857 = vmatpush2.bf16.msra.mxu0 0
        %858 = vmatprep.subr.bf16.mxu0 0
        %859 = vmatpush2.bf16.msra.mxu0 0
        %860 = vmatprep.subr.bf16.mxu0 0
        %861 = vmatpush2.bf16.msra.mxu0 0
        %862 = vmatprep.subr.bf16.mxu0 0
        %863 = vmatpush2.bf16.msra.mxu0 0
        %864 = vmatprep.subr.bf16.mxu0 0
        %865 = vmatpush2.bf16.msra.mxu0 0
        %866 = vmatprep.subr.bf16.mxu0 0
        %867 = vmatpush2.bf16.msra.mxu0 0
        %868 = vmatprep.subr.bf16.mxu0 0
        %869 = vmatpush2.bf16.msra.mxu0 0
        %870 = vmatprep.subr.bf16.mxu0 0
        %871 = vmatpush2.bf16.msra.mxu0 0
        %872 = vmatprep.mubr.bf16.mxu0 0
        %873 = vmatmul.mubr.bf16.gmra.mxu0 %v838
        %v874 = vpop.f32.mrf.mxu0
        %v875 = vadd.f32 0.0, %v874
        %v876 = vpop.f32.mrf.mxu0
        %v877 = vpop.f32.mrf.mxu0
        %v878 = vadd.f32 0.0, %v877
        %v879 = vpop.f32.mrf.mxu0
        %880 = vdwg.mxu0
        %881 = vrot.lane.b32.xlu0 %v759, 112
        %v882 = vpop.permute.xlu0 %881
        %883 = vrot.lane.b32.xlu0 %v759, 80
        %v884 = vpop.permute.xlu0 %883
        %v886 = vsel %vm763, %v882, 0
        %v889 = vsel %vm763, %v884, 0
        %891 = vmatprep.subr.bf16.mxu0 0
        %892 = vmatpush1.bf16.xpose.msra.mxu0 0
        %893 = vmatprep.subr.bf16.mxu0 0
        %894 = vmatpush1.bf16.xpose.msra.mxu0 0
        %895 = vmatprep.subr.bf16.mxu0 0
        %896 = vmatpush1.bf16.xpose.msra.mxu0 0
        %897 = vmatprep.subr.bf16.mxu0 0
        %898 = vmatpush1.bf16.xpose.msra.mxu0 0
        %899 = vmatprep.subr.bf16.mxu0 0
        %900 = vmatpush1.bf16.xpose.msra.mxu0 0
        %901 = vmatprep.subr.bf16.mxu0 0
        %902 = vmatpush1.bf16.xpose.msra.mxu0 0
        %903 = vmatprep.subr.bf16.mxu0 0
        %904 = vmatpush1.bf16.xpose.msra.mxu0 0
        %905 = vmatprep.subr.bf16.mxu0 0
        %906 = vmatpush1.bf16.xpose.msra.mxu0 %v889
        %907 = vmatprep.subr.bf16.mxu0 0
        %908 = vmatpush2.bf16.xpose.msra.mxu0 0
        %909 = vmatprep.subr.bf16.mxu0 0
        %910 = vmatpush2.bf16.xpose.msra.mxu0 0
        %911 = vmatprep.subr.bf16.mxu0 0
        %912 = vmatpush2.bf16.xpose.msra.mxu0 0
        %913 = vmatprep.subr.bf16.mxu0 0
        %914 = vmatpush2.bf16.xpose.msra.mxu0 0
        %915 = vmatprep.subr.bf16.mxu0 0
        %916 = vmatpush2.bf16.xpose.msra.mxu0 0
        %917 = vmatprep.subr.bf16.mxu0 0
        %918 = vmatpush2.bf16.xpose.msra.mxu0 0
        %919 = vmatprep.subr.bf16.mxu0 0
        %920 = vmatpush2.bf16.xpose.msra.mxu0 0
        %921 = vmatprep.subr.bf16.mxu0 0
        %922 = vmatpush2.bf16.xpose.msra.mxu0 0
        %923 = vmatprep.mubr.bf16.mxu0 0
        %924 = vmatmul.mubr.bf16.gmra.mxu0 %v886
        %v925 = vpop.f32.mrf.mxu0
        %v926 = vadd.f32 0.0, %v925
        %v927 = vpop.f32.mrf.mxu0
        %v928 = vpop.f32.mrf.mxu0
        %v929 = vadd.f32 0.0, %v928
        %v930 = vpop.f32.mrf.mxu0
        %931 = vdwg.mxu0
        %v932 = vsel %vm763, %v926, -inf
        %933 = vmax.xlane.f32.xlu0 %v932
        %v934 = vpop.xlane.xlu0 %933
        %v935 = vsel %vm763, %v929, -inf
        %936 = vmax.xlane.f32.xlu0 %v935
        %v937 = vpop.xlane.xlu0 %936
        %v938 = vsub.f32 %v926, %v934
        %v939 = vsub.f32 %v929, %v937
        %v940 = vmul.f32 %v938, 1.442695
        %v941 = vpow.pop %v940
        %v942 = vmul.f32 %v939, 1.442695
        %v943 = vpow.pop %v942
        %v944 = vsel %vm763, %v941, 0.0
        %945 = vadd.xlane.f32.xlu0 %v944
        %v946 = vpop.xlane.xlu0 %945
        %v947 = vsel %vm763, %v943, 0.0
        %948 = vadd.xlane.f32.xlu0 %v947
        %v949 = vpop.xlane.xlu0 %948
        %v950 = vrcp.pop %v946
        %v951 = vrcp.pop %v949
        %v952 = vmul.f32 %v941, %v950
        %v953 = vmul.f32 %v943, %v951
        %v954 = vpack.c.bf16 %v953, %v952
        %955 = vrot.lane.b32.xlu0 %v759, 48
        %v956 = vpop.permute.xlu0 %955
        %v959 = vsel %vm763, %v954, 0
        %961 = vmatprep.subr.bf16.mxu0 0
        %962 = vmatpush1.bf16.msra.mxu0 0
        %963 = vmatprep.subr.bf16.mxu0 0
        %964 = vmatpush1.bf16.msra.mxu0 0
        %965 = vmatprep.subr.bf16.mxu0 0
        %966 = vmatpush1.bf16.msra.mxu0 0
        %967 = vmatprep.subr.bf16.mxu0 0
        %968 = vmatpush1.bf16.msra.mxu0 0
        %969 = vmatprep.subr.bf16.mxu0 0
        %970 = vmatpush1.bf16.msra.mxu0 0
        %971 = vmatprep.subr.bf16.mxu0 0
        %972 = vmatpush1.bf16.msra.mxu0 0
        %973 = vmatprep.subr.bf16.mxu0 0
        %974 = vmatpush1.bf16.msra.mxu0 0
        %975 = vmatprep.subr.bf16.mxu0 0
        %976 = vmatpush1.bf16.msra.mxu0 %v956
        %977 = vmatprep.subr.bf16.mxu0 0
        %978 = vmatpush2.bf16.msra.mxu0 0
        %979 = vmatprep.subr.bf16.mxu0 0
        %980 = vmatpush2.bf16.msra.mxu0 0
        %981 = vmatprep.subr.bf16.mxu0 0
        %982 = vmatpush2.bf16.msra.mxu0 0
        %983 = vmatprep.subr.bf16.mxu0 0
        %984 = vmatpush2.bf16.msra.mxu0 0
        %985 = vmatprep.subr.bf16.mxu0 0
        %986 = vmatpush2.bf16.msra.mxu0 0
        %987 = vmatprep.subr.bf16.mxu0 0
        %988 = vmatpush2.bf16.msra.mxu0 0
        %989 = vmatprep.subr.bf16.mxu0 0
        %990 = vmatpush2.bf16.msra.mxu0 0
        %991 = vmatprep.subr.bf16.mxu0 0
        %992 = vmatpush2.bf16.msra.mxu0 0
        %993 = vmatprep.mubr.bf16.mxu0 0
        %994 = vmatmul.mubr.bf16.gmra.mxu0 %v959
        %v995 = vpop.f32.mrf.mxu0
        %v996 = vadd.f32 0.0, %v995
        %v997 = vpop.f32.mrf.mxu0
        %v998 = vpop.f32.mrf.mxu0
        %v999 = vadd.f32 0.0, %v998
        %v1000 = vpop.f32.mrf.mxu0
        %1001 = vdwg.mxu0
        %1004 = vrot.lane.b32.xlu0 %v996, 16
        %v1005 = vpop.permute.xlu0 %1004
        %1006 = vrot.lane.b32.xlu0 %v999, 16
        %v1007 = vpop.permute.xlu0 %1006
        %v1010 = vsel %vm763, %v875, %v1005
        %v1011 = vsel %vm763, %v878, %v1007
        %v1012 = vpack.c.bf16 %v1011, %v1010
        %v1013 = vld [vmem:[%s8] sm:$0xf]
        %v1014 = vld [vmem:[%s8 + $0x4] sm:$0xf]
        %v1015 = vld [vmem:[%s8 + $0x8] sm:$0xf]
        %v1016 = vld [vmem:[%s8 + $0xc] sm:$0xf]
        %v1017 = vld [vmem:[%s9] sm:$0x1]
        %v1019 = vlaneseq
        %v1020 = vshrl.u32 %v1019, 7
        %v1021 = vsub.s32 0, %v1020
        %v1022 = vrot.slane %v1017, %v1021
        %v1028 = vunpack.c.l.b16 %v1013
        %v1029 = vunpack.c.l.b16 %v1014
        %v1030 = vunpack.c.l.b16 %v1015
        %v1031 = vunpack.c.l.b16 %v1016
        %v1032 = vpack.c.b16 %v1029, %v1028
        %v1033 = vpack.c.b16 %v1031, %v1030
        %v1037 = vsel %vm647, %v1012, 0
        %1039 = vmatprep.subr.bf16.mxu0 0
        %1040 = vmatpush1.bf16.msra.mxu0 0
        %1041 = vmatprep.subr.bf16.mxu0 0
        %1042 = vmatpush1.bf16.msra.mxu0 0
        %1043 = vmatprep.subr.bf16.mxu0 0
        %1044 = vmatpush1.bf16.msra.mxu0 0
        %1045 = vmatprep.subr.bf16.mxu0 0
        %1046 = vmatpush1.bf16.msra.mxu0 0
        %1047 = vmatprep.subr.bf16.mxu0 0
        %1048 = vmatpush1.bf16.msra.mxu0 0
        %1049 = vmatprep.subr.bf16.mxu0 0
        %1050 = vmatpush1.bf16.msra.mxu0 0
        %1051 = vmatprep.subr.bf16.mxu0 0
        %1052 = vmatpush1.bf16.msra.mxu0 %v1033
        %1053 = vmatprep.subr.bf16.mxu0 0
        %1054 = vmatpush1.bf16.msra.mxu0 %v1032
        %1055 = vmatprep.subr.bf16.mxu0 0
        %1056 = vmatpush2.bf16.msra.mxu0 0
        %1057 = vmatprep.subr.bf16.mxu0 0
        %1058 = vmatpush2.bf16.msra.mxu0 0
        %1059 = vmatprep.subr.bf16.mxu0 0
        %1060 = vmatpush2.bf16.msra.mxu0 0
        %1061 = vmatprep.subr.bf16.mxu0 0
        %1062 = vmatpush2.bf16.msra.mxu0 0
        %1063 = vmatprep.subr.bf16.mxu0 0
        %1064 = vmatpush2.bf16.msra.mxu0 0
        %1065 = vmatprep.subr.bf16.mxu0 0
        %1066 = vmatpush2.bf16.msra.mxu0 0
        %1067 = vmatprep.subr.bf16.mxu0 0
        %1068 = vmatpush2.bf16.msra.mxu0 0
        %1069 = vmatprep.subr.bf16.mxu0 0
        %1070 = vmatpush2.bf16.msra.mxu0 0
        %1071 = vmatprep.mubr.bf16.mxu0 0
        %1072 = vmatmul.mubr.bf16.gmra.mxu0 %v1037
        %v1073 = vpop.f32.mrf.mxu0
        %v1074 = vadd.f32 %v1022, %v1073
        %v1075 = vpop.f32.mrf.mxu0
        %v1076 = vpop.f32.mrf.mxu0
        %v1077 = vadd.f32 %v1022, %v1076
        %v1078 = vpop.f32.mrf.mxu0
        %1079 = vdwg.mxu0
        %v1080 = vadd.f32 %v643, %v1074
        %v1081 = vadd.f32 %v644, %v1077
        %v1082 = vld [vmem:[%s10] sm:$0x1]
        %v1083 = vld [vmem:[%s11] sm:$0x1]
        %v1084 = vsel %vm647, %v1080, 0.0
        %1085 = vadd.xlane.f32.xlu0 %v1084
        %v1086 = vpop.xlane.xlu0 %1085
        %v1087 = vsel %vm647, %v1081, 0.0
        %1088 = vadd.xlane.f32.xlu0 %v1087
        %v1089 = vpop.xlane.xlu0 %1088
        %v1090 = vmul.f32 %v1086, %v654
        %v1091 = vmul.f32 %v1089, %v654
        %v1092 = vsub.f32 %v1080, %v1090
        %v1093 = vsub.f32 %v1081, %v1091
        %v1094 = vmul.f32 %v1092, %v1092
        %v1095 = vmul.f32 %v1093, %v1093
        %v1096 = vsel %vm647, %v1094, 0.0
        %1097 = vadd.xlane.f32.xlu0 %v1096
        %v1098 = vpop.xlane.xlu0 %1097
        %v1099 = vsel %vm647, %v1095, 0.0
        %1100 = vadd.xlane.f32.xlu0 %v1099
        %v1101 = vpop.xlane.xlu0 %1100
        %v1102 = vmul.f32 %v1098, %v654
        %v1103 = vmul.f32 %v1101, %v654
        %v1104 = vadd.f32 %v1102, 1e-06
        %v1105 = vadd.f32 %v1103, 1e-06
        %v1106 = vrsqrt.pop %v1104
        %v1107 = vrsqrt.pop %v1105
        %v1108 = vmul.f32 %v1092, %v1106
        %v1109 = vmul.f32 %v1093, %v1107
        %v1111 = vlaneseq
        %v1112 = vshrl.u32 %v1111, 7
        %v1113 = vsub.s32 0, %v1112
        %v1114 = vrot.slane %v1082, %v1113
        %v1116 = vmul.f32 %v1108, %v1114
        %v1117 = vmul.f32 %v1109, %v1114
        %v1119 = vlaneseq
        %v1120 = vshrl.u32 %v1119, 7
        %v1121 = vsub.s32 0, %v1120
        %v1122 = vrot.slane %v1083, %v1121
        %v1124 = vadd.f32 %v1116, %v1122
        %v1125 = vadd.f32 %v1117, %v1122
        %v1126 = vpack.c.bf16 %v1125, %v1124
        %v1127 = vld [vmem:[%s12] sm:$0xf]
        %v1128 = vld [vmem:[%s12 + $0x4] sm:$0xf]
        %v1129 = vld [vmem:[%s12 + $0x8] sm:$0xf]
        %v1130 = vld [vmem:[%s12 + $0xc] sm:$0xf]
        %v1131 = vld [vmem:[%s13] sm:$0x1]
        %v1133 = vlaneseq
        %v1134 = vshrl.u32 %v1133, 7
        %v1135 = vsub.s32 0, %v1134
        %v1136 = vrot.slane %v1131, %v1135
        %v1142 = vunpack.c.l.b16 %v1127
        %v1143 = vunpack.c.l.b16 %v1128
        %v1144 = vunpack.c.l.b16 %v1129
        %v1145 = vunpack.c.l.b16 %v1130
        %v1146 = vpack.c.b16 %v1143, %v1142
        %v1147 = vpack.c.b16 %v1145, %v1144
        %v1151 = vsel %vm647, %v1126, 0
        %1153 = vmatprep.subr.bf16.mxu0 0
        %1154 = vmatpush1.bf16.msra.mxu0 0
        %1155 = vmatprep.subr.bf16.mxu0 0
        %1156 = vmatpush1.bf16.msra.mxu0 0
        %1157 = vmatprep.subr.bf16.mxu0 0
        %1158 = vmatpush1.bf16.msra.mxu0 0
        %1159 = vmatprep.subr.bf16.mxu0 0
        %1160 = vmatpush1.bf16.msra.mxu0 0
        %1161 = vmatprep.subr.bf16.mxu0 0
        %1162 = vmatpush1.bf16.msra.mxu0 0
        %1163 = vmatprep.subr.bf16.mxu0 0
        %1164 = vmatpush1.bf16.msra.mxu0 0
        %1165 = vmatprep.subr.bf16.mxu0 0
        %1166 = vmatpush1.bf16.msra.mxu0 %v1147
        %1167 = vmatprep.subr.bf16.mxu0 0
        %1168 = vmatpush1.bf16.msra.mxu0 %v1146
        %1169 = vmatprep.subr.bf16.mxu0 0
        %1170 = vmatpush2.bf16.msra.mxu0 0
        %1171 = vmatprep.subr.bf16.mxu0 0
        %1172 = vmatpush2.bf16.msra.mxu0 0
        %1173 = vmatprep.subr.bf16.mxu0 0
        %1174 = vmatpush2.bf16.msra.mxu0 0
        %1175 = vmatprep.subr.bf16.mxu0 0
        %1176 = vmatpush2.bf16.msra.mxu0 0
        %1177 = vmatprep.subr.bf16.mxu0 0
        %1178 = vmatpush2.bf16.msra.mxu0 0
        %1179 = vmatprep.subr.bf16.mxu0 0
        %1180 = vmatpush2.bf16.msra.mxu0 0
        %1181 = vmatprep.subr.bf16.mxu0 0
        %1182 = vmatpush2.bf16.msra.mxu0 0
        %1183 = vmatprep.subr.bf16.mxu0 0
        %1184 = vmatpush2.bf16.msra.mxu0 0
        %1185 = vmatprep.mubr.bf16.mxu0 0
        %1186 = vmatmul.mubr.bf16.gmra.mxu0 %v1151
        %v1187 = vpop.f32.mrf.mxu0
        %v1188 = vadd.f32 %v1136, %v1187
        %v1189 = vpop.f32.mrf.mxu0
        %v1190 = vpop.f32.mrf.mxu0
        %v1191 = vadd.f32 %v1136, %v1190
        %v1192 = vpop.f32.mrf.mxu0
        %1193 = vdwg.mxu0
        %v1194 = vmul.f32 %v1188, 0.5
        %v1195 = vmul.f32 %v1191, 0.5
        %v1196 = vmul.f32 %v1188, 0.044715
        %v1197 = vmul.f32 %v1191, 0.044715
        %v1198 = vmul.f32 %v1196, %v1188
        %v1199 = vmul.f32 %v1197, %v1191
        %v1200 = vmul.f32 %v1198, %v1188
        %v1201 = vmul.f32 %v1199, %v1191
        %v1202 = vadd.f32 %v1188, %v1200
        %v1203 = vadd.f32 %v1191, %v1201
        %v1204 = vmul.f32 %v1202, 0.7978846
        %v1205 = vmul.f32 %v1203, 0.7978846
        %v1206 = vtanh.pop %v1204
        %v1207 = vtanh.pop %v1205
        %v1208 = vadd.f32 %v1206, 1.0
        %v1209 = vadd.f32 %v1207, 1.0
        %v1210 = vmul.f32 %v1194, %v1208
        %v1211 = vmul.f32 %v1195, %v1209
        %v1212 = vpack.c.bf16 %v1211, %v1210
        %v1213 = vld [vmem:[%s14] sm:$0xf]
        %v1214 = vld [vmem:[%s14 + $0x4] sm:$0xf]
        %v1215 = vld [vmem:[%s14 + $0x8] sm:$0xf]
        %v1216 = vld [vmem:[%s14 + $0xc] sm:$0xf]
        %v1217 = vld [vmem:[%s14 + $0x10] sm:$0xf]
        %v1218 = vld [vmem:[%s14 + $0x14] sm:$0xf]
        %v1219 = vld [vmem:[%s14 + $0x18] sm:$0xf]
        %v1220 = vld [vmem:[%s14 + $0x1c] sm:$0xf]
        %v1221 = vld [vmem:[%s15] sm:$0x1]
        %v1223 = vlaneseq
        %v1224 = vshrl.u32 %v1223, 7
        %v1225 = vsub.s32 0, %v1224
        %v1226 = vrot.slane %v1221, %v1225
        %v1236 = vunpack.c.l.b16 %v1213
        %v1237 = vunpack.c.l.b16 %v1214
        %v1238 = vunpack.c.l.b16 %v1215
        %v1239 = vunpack.c.l.b16 %v1216
        %v1240 = vunpack.c.l.b16 %v1217
        %v1241 = vunpack.c.l.b16 %v1218
        %v1242 = vunpack.c.l.b16 %v1219
        %v1243 = vunpack.c.l.b16 %v1220
        %v1244 = vpack.c.b16 %v1237, %v1236
        %v1245 = vpack.c.b16 %v1239, %v1238
        %v1246 = vpack.c.b16 %v1241, %v1240
        %v1247 = vpack.c.b16 %v1243, %v1242
        %vm1252 = vcmask 523264
        %v1254 = vsel %vm1252, %v1212, 0
        %1256 = vmatprep.subr.bf16.mxu0 0
        %1257 = vmatpush1.bf16.msra.mxu0 0
        %1258 = vmatprep.subr.bf16.mxu0 0
        %1259 = vmatpush1.bf16.msra.mxu0 0
        %1260 = vmatprep.subr.bf16.mxu0 0
        %1261 = vmatpush1.bf16.msra.mxu0 0
        %1262 = vmatprep.subr.bf16.mxu0 0
        %1263 = vmatpush1.bf16.msra.mxu0 0
        %1264 = vmatprep.subr.bf16.mxu0 0
        %1265 = vmatpush1.bf16.msra.mxu0 %v1247
        %1266 = vmatprep.subr.bf16.mxu0 0
        %1267 = vmatpush1.bf16.msra.mxu0 %v1246
        %1268 = vmatprep.subr.bf16.mxu0 0
        %1269 = vmatpush1.bf16.msra.mxu0 %v1245
        %1270 = vmatprep.subr.bf16.mxu0 0
        %1271 = vmatpush1.bf16.msra.mxu0 %v1244
        %1272 = vmatprep.subr.bf16.mxu0 0
        %1273 = vmatpush2.bf16.msra.mxu0 0
        %1274 = vmatprep.subr.bf16.mxu0 0
        %1275 = vmatpush2.bf16.msra.mxu0 0
        %1276 = vmatprep.subr.bf16.mxu0 0
        %1277 = vmatpush2.bf16.msra.mxu0 0
        %1278 = vmatprep.subr.bf16.mxu0 0
        %1279 = vmatpush2.bf16.msra.mxu0 0
        %1280 = vmatprep.subr.bf16.mxu0 0
        %1281 = vmatpush2.bf16.msra.mxu0 0
        %1282 = vmatprep.subr.bf16.mxu0 0
        %1283 = vmatpush2.bf16.msra.mxu0 0
        %1284 = vmatprep.subr.bf16.mxu0 0
        %1285 = vmatpush2.bf16.msra.mxu0 0
        %1286 = vmatprep.subr.bf16.mxu0 0
        %1287 = vmatpush2.bf16.msra.mxu0 0
        %1288 = vmatprep.mubr.bf16.mxu0 0
        %1289 = vmatmul.mubr.bf16.gmra.mxu0 %v1254
        %v1290 = vpop.f32.mrf.mxu0
        %v1291 = vadd.f32 %v1226, %v1290
        %v1292 = vpop.f32.mrf.mxu0
        %v1293 = vpop.f32.mrf.mxu0
        %v1294 = vadd.f32 %v1226, %v1293
        %v1295 = vpop.f32.mrf.mxu0
        %1296 = vdwg.mxu0
        %v1297 = vadd.f32 %v1080, %v1291
        %v1298 = vadd.f32 %v1081, %v1294
        %1299 = vst.msk [vmem:[%s514] sm:$0xff] %vm647, %v1297
        %1300 = vst.msk [vmem:[%s514 + $0x8] sm:$0xff] %vm647, %v1298
        %s1301 = scalar_lea.vmem %s4, 1
        %v1302 = vld [vmem:[%s1301] sm:$0x1]
        %s1303 = scalar_lea.vmem %s5, 1
        %v1304 = vld [vmem:[%s1303] sm:$0x1]
        %v1305 = vsel %vm647, %v1297, 0.0
        %1306 = vadd.xlane.f32.xlu0 %v1305
        %v1307 = vpop.xlane.xlu0 %1306
        %v1308 = vsel %vm647, %v1298, 0.0
        %1309 = vadd.xlane.f32.xlu0 %v1308
        %v1310 = vpop.xlane.xlu0 %1309
        %v1311 = vmul.f32 %v1307, %v654
        %v1312 = vmul.f32 %v1310, %v654
        %v1313 = vsub.f32 %v1297, %v1311
        %v1314 = vsub.f32 %v1298, %v1312
        %v1315 = vmul.f32 %v1313, %v1313
        %v1316 = vmul.f32 %v1314, %v1314
        %v1317 = vsel %vm647, %v1315, 0.0
        %1318 = vadd.xlane.f32.xlu0 %v1317
        %v1319 = vpop.xlane.xlu0 %1318
        %v1320 = vsel %vm647, %v1316, 0.0
        %1321 = vadd.xlane.f32.xlu0 %v1320
        %v1322 = vpop.xlane.xlu0 %1321
        %v1323 = vmul.f32 %v1319, %v654
        %v1324 = vmul.f32 %v1322, %v654
        %v1325 = vadd.f32 %v1323, 1e-06
        %v1326 = vadd.f32 %v1324, 1e-06
        %v1327 = vrsqrt.pop %v1325
        %v1328 = vrsqrt.pop %v1326
        %v1329 = vmul.f32 %v1313, %v1327
        %v1330 = vmul.f32 %v1314, %v1328
        %v1332 = vlaneseq
        %v1333 = vshrl.u32 %v1332, 7
        %v1334 = vsub.s32 0, %v1333
        %v1335 = vrot.slane %v1302, %v1334
        %v1337 = vmul.f32 %v1329, %v1335
        %v1338 = vmul.f32 %v1330, %v1335
        %v1340 = vlaneseq
        %v1341 = vshrl.u32 %v1340, 7
        %v1342 = vsub.s32 0, %v1341
        %v1343 = vrot.slane %v1304, %v1342
        %v1345 = vadd.f32 %v1337, %v1343
        %v1346 = vadd.f32 %v1338, %v1343
        %v1347 = vpack.c.bf16 %v1346, %v1345
        %s1348 = scalar_lea.vmem %s6, 16
        %v1349 = vld [vmem:[%s1348] sm:$0xf]
        %v1350 = vld [vmem:[%s1348 + $0x4] sm:$0xf]
        %v1351 = vld [vmem:[%s1348 + $0x8] sm:$0xf]
        %v1352 = vld [vmem:[%s1348 + $0xc] sm:$0xf]
        %s1353 = scalar_lea.vmem %s7, 1
        %v1354 = vld [vmem:[%s1353] sm:$0x1]
        %v1356 = vlaneseq
        %v1357 = vshrl.u32 %v1356, 7
        %v1358 = vsub.s32 0, %v1357
        %v1359 = vrot.slane %v1354, %v1358
        %v1365 = vunpack.c.l.b16 %v1349
        %v1366 = vunpack.c.l.b16 %v1350
        %v1367 = vunpack.c.l.b16 %v1351
        %v1368 = vunpack.c.l.b16 %v1352
        %v1369 = vpack.c.b16 %v1366, %v1365
        %v1370 = vpack.c.b16 %v1368, %v1367
        %v1374 = vsel %vm647, %v1347, 0
        %1376 = vmatprep.subr.bf16.mxu0 0
        %1377 = vmatpush1.bf16.msra.mxu0 0
        %1378 = vmatprep.subr.bf16.mxu0 0
        %1379 = vmatpush1.bf16.msra.mxu0 0
        %1380 = vmatprep.subr.bf16.mxu0 0
        %1381 = vmatpush1.bf16.msra.mxu0 0
        %1382 = vmatprep.subr.bf16.mxu0 0
        %1383 = vmatpush1.bf16.msra.mxu0 0
        %1384 = vmatprep.subr.bf16.mxu0 0
        %1385 = vmatpush1.bf16.msra.mxu0 0
        %1386 = vmatprep.subr.bf16.mxu0 0
        %1387 = vmatpush1.bf16.msra.mxu0 0
        %1388 = vmatprep.subr.bf16.mxu0 0
        %1389 = vmatpush1.bf16.msra.mxu0 %v1370
        %1390 = vmatprep.subr.bf16.mxu0 0
        %1391 = vmatpush1.bf16.msra.mxu0 %v1369
        %1392 = vmatprep.subr.bf16.mxu0 0
        %1393 = vmatpush2.bf16.msra.mxu0 0
        %1394 = vmatprep.subr.bf16.mxu0 0
        %1395 = vmatpush2.bf16.msra.mxu0 0
        %1396 = vmatprep.subr.bf16.mxu0 0
        %1397 = vmatpush2.bf16.msra.mxu0 0
        %1398 = vmatprep.subr.bf16.mxu0 0
        %1399 = vmatpush2.bf16.msra.mxu0 0
        %1400 = vmatprep.subr.bf16.mxu0 0
        %1401 = vmatpush2.bf16.msra.mxu0 0
        %1402 = vmatprep.subr.bf16.mxu0 0
        %1403 = vmatpush2.bf16.msra.mxu0 0
        %1404 = vmatprep.subr.bf16.mxu0 0
        %1405 = vmatpush2.bf16.msra.mxu0 0
        %1406 = vmatprep.subr.bf16.mxu0 0
        %1407 = vmatpush2.bf16.msra.mxu0 0
        %1408 = vmatprep.mubr.bf16.mxu0 0
        %1409 = vmatmul.mubr.bf16.gmra.mxu0 %v1374
        %v1410 = vpop.f32.mrf.mxu0
        %v1411 = vadd.f32 %v1359, %v1410
        %v1412 = vpop.f32.mrf.mxu0
        %v1413 = vpop.f32.mrf.mxu0
        %v1414 = vadd.f32 %v1359, %v1413
        %v1415 = vpop.f32.mrf.mxu0
        %1416 = vdwg.mxu0
        %v1417 = vpack.c.bf16 %v1414, %v1411
        %1419 = vrot.lane.b32.xlu0 %v1417, 96
        %v1420 = vpop.permute.xlu0 %1419
        %v1422 = vsel %vm763, %v1417, 0
        %v1425 = vsel %vm763, %v1420, 0
        %1427 = vmatprep.subr.bf16.mxu0 0
        %1428 = vmatpush1.bf16.xpose.msra.mxu0 0
        %1429 = vmatprep.subr.bf16.mxu0 0
        %1430 = vmatpush1.bf16.xpose.msra.mxu0 0
        %1431 = vmatprep.subr.bf16.mxu0 0
        %1432 = vmatpush1.bf16.xpose.msra.mxu0 0
        %1433 = vmatprep.subr.bf16.mxu0 0
        %1434 = vmatpush1.bf16.xpose.msra.mxu0 0
        %1435 = vmatprep.subr.bf16.mxu0 0
        %1436 = vmatpush1.bf16.xpose.msra.mxu0 0
        %1437 = vmatprep.subr.bf16.mxu0 0
        %1438 = vmatpush1.bf16.xpose.msra.mxu0 0
        %1439 = vmatprep.subr.bf16.mxu0 0
        %1440 = vmatpush1.bf16.xpose.msra.mxu0 0
        %1441 = vmatprep.subr.bf16.mxu0 0
        %1442 = vmatpush1.bf16.xpose.msra.mxu0 %v1425
        %1443 = vmatprep.subr.bf16.mxu0 0
        %1444 = vmatpush2.bf16.xpose.msra.mxu0 0
        %1445 = vmatprep.subr.bf16.mxu0 0
        %1446 = vmatpush2.bf16.xpose.msra.mxu0 0
        %1447 = vmatprep.subr.bf16.mxu0 0
        %1448 = vmatpush2.bf16.xpose.msra.mxu0 0
        %1449 = vmatprep.subr.bf16.mxu0 0
        %1450 = vmatpush2.bf16.xpose.msra.mxu0 0
        %1451 = vmatprep.subr.bf16.mxu0 0
        %1452 = vmatpush2.bf16.xpose.msra.mxu0 0
        %1453 = vmatprep.subr.bf16.mxu0 0
        %1454 = vmatpush2.bf16.xpose.msra.mxu0 0
        %1455 = vmatprep.subr.bf16.mxu0 0
        %1456 = vmatpush2.bf16.xpose.msra.mxu0 0
        %1457 = vmatprep.subr.bf16.mxu0 0
        %1458 = vmatpush2.bf16.xpose.msra.mxu0 0
        %1459 = vmatprep.mubr.bf16.mxu0 0
        %1460 = vmatmul.mubr.bf16.gmra.mxu0 %v1422
        %v1461 = vpop.f32.mrf.mxu0
        %v1462 = vadd.f32 0.0, %v1461
        %v1463 = vpop.f32.mrf.mxu0
        %v1464 = vpop.f32.mrf.mxu0
        %v1465 = vadd.f32 0.0, %v1464
        %v1466 = vpop.f32.mrf.mxu0
        %1467 = vdwg.mxu0
        %v1468 = vsel %vm763, %v1462, -inf
        %1469 = vmax.xlane.f32.xlu0 %v1468
        %v1470 = vpop.xlane.xlu0 %1469
        %v1471 = vsel %vm763, %v1465, -inf
        %1472 = vmax.xlane.f32.xlu0 %v1471
        %v1473 = vpop.xlane.xlu0 %1472
        %v1474 = vsub.f32 %v1462, %v1470
        %v1475 = vsub.f32 %v1465, %v1473
        %v1476 = vmul.f32 %v1474, 1.442695
        %v1477 = vpow.pop %v1476
        %v1478 = vmul.f32 %v1475, 1.442695
        %v1479 = vpow.pop %v1478
        %v1480 = vsel %vm763, %v1477, 0.0
        %1481 = vadd.xlane.f32.xlu0 %v1480
        %v1482 = vpop.xlane.xlu0 %1481
        %v1483 = vsel %vm763, %v1479, 0.0
        %1484 = vadd.xlane.f32.xlu0 %v1483
        %v1485 = vpop.xlane.xlu0 %1484
        %v1486 = vrcp.pop %v1482
        %v1487 = vrcp.pop %v1485
        %v1488 = vmul.f32 %v1477, %v1486
        %v1489 = vmul.f32 %v1479, %v1487
        %v1490 = vpack.c.bf16 %v1489, %v1488
        %1491 = vrot.lane.b32.xlu0 %v1417, 64
        %v1492 = vpop.permute.xlu0 %1491
        %v1495 = vsel %vm763, %v1490, 0
        %1497 = vmatprep.subr.bf16.mxu0 0
        %1498 = vmatpush1.bf16.msra.mxu0 0
        %1499 = vmatprep.subr.bf16.mxu0 0
        %1500 = vmatpush1.bf16.msra.mxu0 0
        %1501 = vmatprep.subr.bf16.mxu0 0
        %1502 = vmatpush1.bf16.msra.mxu0 0
        %1503 = vmatprep.subr.bf16.mxu0 0
        %1504 = vmatpush1.bf16.msra.mxu0 0
        %1505 = vmatprep.subr.bf16.mxu0 0
        %1506 = vmatpush1.bf16.msra.mxu0 0
        %1507 = vmatprep.subr.bf16.mxu0 0
        %1508 = vmatpush1.bf16.msra.mxu0 0
        %1509 = vmatprep.subr.bf16.mxu0 0
        %1510 = vmatpush1.bf16.msra.mxu0 0
        %1511 = vmatprep.subr.bf16.mxu0 0
        %1512 = vmatpush1.bf16.msra.mxu0 %v1492
        %1513 = vmatprep.subr.bf16.mxu0 0
        %1514 = vmatpush2.bf16.msra.mxu0 0
        %1515 = vmatprep.subr.bf16.mxu0 0
        %1516 = vmatpush2.bf16.msra.mxu0 0
        %1517 = vmatprep.subr.bf16.mxu0 0
        %1518 = vmatpush2.bf16.msra.mxu0 0
        %1519 = vmatprep.subr.bf16.mxu0 0
        %1520 = vmatpush2.bf16.msra.mxu0 0
        %1521 = vmatprep.subr.bf16.mxu0 0
        %1522 = vmatpush2.bf16.msra.mxu0 0
        %1523 = vmatprep.subr.bf16.mxu0 0
        %1524 = vmatpush2.bf16.msra.mxu0 0
        %1525 = vmatprep.subr.bf16.mxu0 0
        %1526 = vmatpush2.bf16.msra.mxu0 0
        %1527 = vmatprep.subr.bf16.mxu0 0
        %1528 = vmatpush2.bf16.msra.mxu0 0
        %1529 = vmatprep.mubr.bf16.mxu0 0
        %1530 = vmatmul.mubr.bf16.gmra.mxu0 %v1495
        %v1531 = vpop.f32.mrf.mxu0
        %v1532 = vadd.f32 0.0, %v1531
        %v1533 = vpop.f32.mrf.mxu0
        %v1534 = vpop.f32.mrf.mxu0
        %v1535 = vadd.f32 0.0, %v1534
        %v1536 = vpop.f32.mrf.mxu0
        %1537 = vdwg.mxu0
        %1538 = vrot.lane.b32.xlu0 %v1417, 112
        %v1539 = vpop.permute.xlu0 %1538
        %1540 = vrot.lane.b32.xlu0 %v1417, 80
        %v1541 = vpop.permute.xlu0 %1540
        %v1543 = vsel %vm763, %v1539, 0
        %v1546 = vsel %vm763, %v1541, 0
        %1548 = vmatprep.subr.bf16.mxu0 0
        %1549 = vmatpush1.bf16.xpose.msra.mxu0 0
        %1550 = vmatprep.subr.bf16.mxu0 0
        %1551 = vmatpush1.bf16.xpose.msra.mxu0 0
        %1552 = vmatprep.subr.bf16.mxu0 0
        %1553 = vmatpush1.bf16.xpose.msra.mxu0 0
        %1554 = vmatprep.subr.bf16.mxu0 0
        %1555 = vmatpush1.bf16.xpose.msra.mxu0 0
        %1556 = vmatprep.subr.bf16.mxu0 0
        %1557 = vmatpush1.bf16.xpose.msra.mxu0 0
        %1558 = vmatprep.subr.bf16.mxu0 0
        %1559 = vmatpush1.bf16.xpose.msra.mxu0 0
        %1560 = vmatprep.subr.bf16.mxu0 0
        %1561 = vmatpush1.bf16.xpose.msra.mxu0 0
        %1562 = vmatprep.subr.bf16.mxu0 0
        %1563 = vmatpush1.bf16.xpose.msra.mxu0 %v1546
        %1564 = vmatprep.subr.bf16.mxu0 0
        %1565 = vmatpush2.bf16.xpose.msra.mxu0 0
        %1566 = vmatprep.subr.bf16.mxu0 0
        %1567 = vmatpush2.bf16.xpose.msra.mxu0 0
        %1568 = vmatprep.subr.bf16.mxu0 0
        %1569 = vmatpush2.bf16.xpose.msra.mxu0 0
        %1570 = vmatprep.subr.bf16.mxu0 0
        %1571 = vmatpush2.bf16.xpose.msra.mxu0 0
        %1572 = vmatprep.subr.bf16.mxu0 0
        %1573 = vmatpush2.bf16.xpose.msra.mxu0 0
        %1574 = vmatprep.subr.bf16.mxu0 0
        %1575 = vmatpush2.bf16.xpose.msra.mxu0 0
        %1576 = vmatprep.subr.bf16.mxu0 0
        %1577 = vmatpush2.bf16.xpose.msra.mxu0 0
        %1578 = vmatprep.subr.bf16.mxu0 0
        %1579 = vmatpush2.bf16.xpose.msra.mxu0 0
        %1580 = vmatprep.mubr.bf16.mxu0 0
        %1581 = vmatmul.mubr.bf16.gmra.mxu0 %v1543
        %v1582 = vpop.f32.mrf.mxu0
        %v1583 = vadd.f32 0.0, %v1582
        %v1584 = vpop.f32.mrf.mxu0
        %v1585 = vpop.f32.mrf.mxu0
        %v1586 = vadd.f32 0.0, %v1585
        %v1587 = vpop.f32.mrf.mxu0
        %1588 = vdwg.mxu0
        %v1589 = vsel %vm763, %v1583, -inf
        %1590 = vmax.xlane.f32.xlu0 %v1589
        %v1591 = vpop.xlane.xlu0 %1590
        %v1592 = vsel %vm763, %v1586, -inf
        %1593 = vmax.xlane.f32.xlu0 %v1592
        %v1594 = vpop.xlane.xlu0 %1593
        %v1595 = vsub.f32 %v1583, %v1591
        %v1596 = vsub.f32 %v1586, %v1594
        %v1597 = vmul.f32 %v1595, 1.442695
        %v1598 = vpow.pop %v1597
        %v1599 = vmul.f32 %v1596, 1.442695
        %v1600 = vpow.pop %v1599
        %v1601 = vsel %vm763, %v1598, 0.0
        %1602 = vadd.xlane.f32.xlu0 %v1601
        %v1603 = vpop.xlane.xlu0 %1602
        %v1604 = vsel %vm763, %v1600, 0.0
        %1605 = vadd.xlane.f32.xlu0 %v1604
        %v1606 = vpop.xlane.xlu0 %1605
        %v1607 = vrcp.pop %v1603
        %v1608 = vrcp.pop %v1606
        %v1609 = vmul.f32 %v1598, %v1607
        %v1610 = vmul.f32 %v1600, %v1608
        %v1611 = vpack.c.bf16 %v1610, %v1609
        %1612 = vrot.lane.b32.xlu0 %v1417, 48
        %v1613 = vpop.permute.xlu0 %1612
        %v1616 = vsel %vm763, %v1611, 0
        %1618 = vmatprep.subr.bf16.mxu0 0
        %1619 = vmatpush1.bf16.msra.mxu0 0
        %1620 = vmatprep.subr.bf16.mxu0 0
        %1621 = vmatpush1.bf16.msra.mxu0 0
        %1622 = vmatprep.subr.bf16.mxu0 0
        %1623 = vmatpush1.bf16.msra.mxu0 0
        %1624 = vmatprep.subr.bf16.mxu0 0
        %1625 = vmatpush1.bf16.msra.mxu0 0
        %1626 = vmatprep.subr.bf16.mxu0 0
        %1627 = vmatpush1.bf16.msra.mxu0 0
        %1628 = vmatprep.subr.bf16.mxu0 0
        %1629 = vmatpush1.bf16.msra.mxu0 0
        %1630 = vmatprep.subr.bf16.mxu0 0
        %1631 = vmatpush1.bf16.msra.mxu0 0
        %1632 = vmatprep.subr.bf16.mxu0 0
        %1633 = vmatpush1.bf16.msra.mxu0 %v1613
        %1634 = vmatprep.subr.bf16.mxu0 0
        %1635 = vmatpush2.bf16.msra.mxu0 0
        %1636 = vmatprep.subr.bf16.mxu0 0
        %1637 = vmatpush2.bf16.msra.mxu0 0
        %1638 = vmatprep.subr.bf16.mxu0 0
        %1639 = vmatpush2.bf16.msra.mxu0 0
        %1640 = vmatprep.subr.bf16.mxu0 0
        %1641 = vmatpush2.bf16.msra.mxu0 0
        %1642 = vmatprep.subr.bf16.mxu0 0
        %1643 = vmatpush2.bf16.msra.mxu0 0
        %1644 = vmatprep.subr.bf16.mxu0 0
        %1645 = vmatpush2.bf16.msra.mxu0 0
        %1646 = vmatprep.subr.bf16.mxu0 0
        %1647 = vmatpush2.bf16.msra.mxu0 0
        %1648 = vmatprep.subr.bf16.mxu0 0
        %1649 = vmatpush2.bf16.msra.mxu0 0
        %1650 = vmatprep.mubr.bf16.mxu0 0
        %1651 = vmatmul.mubr.bf16.gmra.mxu0 %v1616
        %v1652 = vpop.f32.mrf.mxu0
        %v1653 = vadd.f32 0.0, %v1652
        %v1654 = vpop.f32.mrf.mxu0
        %v1655 = vpop.f32.mrf.mxu0
        %v1656 = vadd.f32 0.0, %v1655
        %v1657 = vpop.f32.mrf.mxu0
        %1658 = vdwg.mxu0
        %1661 = vrot.lane.b32.xlu0 %v1653, 16
        %v1662 = vpop.permute.xlu0 %1661
        %1663 = vrot.lane.b32.xlu0 %v1656, 16
        %v1664 = vpop.permute.xlu0 %1663
        %v1667 = vsel %vm763, %v1532, %v1662
        %v1668 = vsel %vm763, %v1535, %v1664
        %v1669 = vpack.c.bf16 %v1668, %v1667
        %s1670 = scalar_lea.vmem %s8, 16
        %v1671 = vld [vmem:[%s1670] sm:$0xf]
        %v1672 = vld [vmem:[%s1670 + $0x4] sm:$0xf]
        %v1673 = vld [vmem:[%s1670 + $0x8] sm:$0xf]
        %v1674 = vld [vmem:[%s1670 + $0xc] sm:$0xf]
        %s1675 = scalar_lea.vmem %s9, 1
        %v1676 = vld [vmem:[%s1675] sm:$0x1]
        %v1678 = vlaneseq
        %v1679 = vshrl.u32 %v1678, 7
        %v1680 = vsub.s32 0, %v1679
        %v1681 = vrot.slane %v1676, %v1680
        %v1687 = vunpack.c.l.b16 %v1671
        %v1688 = vunpack.c.l.b16 %v1672
        %v1689 = vunpack.c.l.b16 %v1673
        %v1690 = vunpack.c.l.b16 %v1674
        %v1691 = vpack.c.b16 %v1688, %v1687
        %v1692 = vpack.c.b16 %v1690, %v1689
        %v1696 = vsel %vm647, %v1669, 0
        %1698 = vmatprep.subr.bf16.mxu0 0
        %1699 = vmatpush1.bf16.msra.mxu0 0
        %1700 = vmatprep.subr.bf16.mxu0 0
        %1701 = vmatpush1.bf16.msra.mxu0 0
        %1702 = vmatprep.subr.bf16.mxu0 0
        %1703 = vmatpush1.bf16.msra.mxu0 0
        %1704 = vmatprep.subr.bf16.mxu0 0
        %1705 = vmatpush1.bf16.msra.mxu0 0
        %1706 = vmatprep.subr.bf16.mxu0 0
        %1707 = vmatpush1.bf16.msra.mxu0 0
        %1708 = vmatprep.subr.bf16.mxu0 0
        %1709 = vmatpush1.bf16.msra.mxu0 0
        %1710 = vmatprep.subr.bf16.mxu0 0
        %1711 = vmatpush1.bf16.msra.mxu0 %v1692
        %1712 = vmatprep.subr.bf16.mxu0 0
        %1713 = vmatpush1.bf16.msra.mxu0 %v1691
        %1714 = vmatprep.subr.bf16.mxu0 0
        %1715 = vmatpush2.bf16.msra.mxu0 0
        %1716 = vmatprep.subr.bf16.mxu0 0
        %1717 = vmatpush2.bf16.msra.mxu0 0
        %1718 = vmatprep.subr.bf16.mxu0 0
        %1719 = vmatpush2.bf16.msra.mxu0 0
        %1720 = vmatprep.subr.bf16.mxu0 0
        %1721 = vmatpush2.bf16.msra.mxu0 0
        %1722 = vmatprep.subr.bf16.mxu0 0
        %1723 = vmatpush2.bf16.msra.mxu0 0
        %1724 = vmatprep.subr.bf16.mxu0 0
        %1725 = vmatpush2.bf16.msra.mxu0 0
        %1726 = vmatprep.subr.bf16.mxu0 0
        %1727 = vmatpush2.bf16.msra.mxu0 0
        %1728 = vmatprep.subr.bf16.mxu0 0
        %1729 = vmatpush2.bf16.msra.mxu0 0
        %1730 = vmatprep.mubr.bf16.mxu0 0
        %1731 = vmatmul.mubr.bf16.gmra.mxu0 %v1696
        %v1732 = vpop.f32.mrf.mxu0
        %v1733 = vadd.f32 %v1681, %v1732
        %v1734 = vpop.f32.mrf.mxu0
        %v1735 = vpop.f32.mrf.mxu0
        %v1736 = vadd.f32 %v1681, %v1735
        %v1737 = vpop.f32.mrf.mxu0
        %1738 = vdwg.mxu0
        %v1739 = vadd.f32 %v1297, %v1733
        %v1740 = vadd.f32 %v1298, %v1736
        %s1741 = scalar_lea.vmem %s10, 1
        %v1742 = vld [vmem:[%s1741] sm:$0x1]
        %s1743 = scalar_lea.vmem %s11, 1
        %v1744 = vld [vmem:[%s1743] sm:$0x1]
        %v1745 = vsel %vm647, %v1739, 0.0
        %1746 = vadd.xlane.f32.xlu0 %v1745
        %v1747 = vpop.xlane.xlu0 %1746
        %v1748 = vsel %vm647, %v1740, 0.0
        %1749 = vadd.xlane.f32.xlu0 %v1748
        %v1750 = vpop.xlane.xlu0 %1749
        %v1751 = vmul.f32 %v1747, %v654
        %v1752 = vmul.f32 %v1750, %v654
        %v1753 = vsub.f32 %v1739, %v1751
        %v1754 = vsub.f32 %v1740, %v1752
        %v1755 = vmul.f32 %v1753, %v1753
        %v1756 = vmul.f32 %v1754, %v1754
        %v1757 = vsel %vm647, %v1755, 0.0
        %1758 = vadd.xlane.f32.xlu0 %v1757
        %v1759 = vpop.xlane.xlu0 %1758
        %v1760 = vsel %vm647, %v1756, 0.0
        %1761 = vadd.xlane.f32.xlu0 %v1760
        %v1762 = vpop.xlane.xlu0 %1761
        %v1763 = vmul.f32 %v1759, %v654
        %v1764 = vmul.f32 %v1762, %v654
        %v1765 = vadd.f32 %v1763, 1e-06
        %v1766 = vadd.f32 %v1764, 1e-06
        %v1767 = vrsqrt.pop %v1765
        %v1768 = vrsqrt.pop %v1766
        %v1769 = vmul.f32 %v1753, %v1767
        %v1770 = vmul.f32 %v1754, %v1768
        %v1772 = vlaneseq
        %v1773 = vshrl.u32 %v1772, 7
        %v1774 = vsub.s32 0, %v1773
        %v1775 = vrot.slane %v1742, %v1774
        %v1777 = vmul.f32 %v1769, %v1775
        %v1778 = vmul.f32 %v1770, %v1775
        %v1780 = vlaneseq
        %v1781 = vshrl.u32 %v1780, 7
        %v1782 = vsub.s32 0, %v1781
        %v1783 = vrot.slane %v1744, %v1782
        %v1785 = vadd.f32 %v1777, %v1783
        %v1786 = vadd.f32 %v1778, %v1783
        %v1787 = vpack.c.bf16 %v1786, %v1785
        %s1788 = scalar_lea.vmem %s12, 16
        %v1789 = vld [vmem:[%s1788] sm:$0xf]
        %v1790 = vld [vmem:[%s1788 + $0x4] sm:$0xf]
        %v1791 = vld [vmem:[%s1788 + $0x8] sm:$0xf]
        %v1792 = vld [vmem:[%s1788 + $0xc] sm:$0xf]
        %s1793 = scalar_lea.vmem %s13, 1
        %v1794 = vld [vmem:[%s1793] sm:$0x1]
        %v1796 = vlaneseq
        %v1797 = vshrl.u32 %v1796, 7
        %v1798 = vsub.s32 0, %v1797
        %v1799 = vrot.slane %v1794, %v1798
        %v1805 = vunpack.c.l.b16 %v1789
        %v1806 = vunpack.c.l.b16 %v1790
        %v1807 = vunpack.c.l.b16 %v1791
        %v1808 = vunpack.c.l.b16 %v1792
        %v1809 = vpack.c.b16 %v1806, %v1805
        %v1810 = vpack.c.b16 %v1808, %v1807
        %v1814 = vsel %vm647, %v1787, 0
        %1816 = vmatprep.subr.bf16.mxu0 0
        %1817 = vmatpush1.bf16.msra.mxu0 0
        %1818 = vmatprep.subr.bf16.mxu0 0
        %1819 = vmatpush1.bf16.msra.mxu0 0
        %1820 = vmatprep.subr.bf16.mxu0 0
        %1821 = vmatpush1.bf16.msra.mxu0 0
        %1822 = vmatprep.subr.bf16.mxu0 0
        %1823 = vmatpush1.bf16.msra.mxu0 0
        %1824 = vmatprep.subr.bf16.mxu0 0
        %1825 = vmatpush1.bf16.msra.mxu0 0
        %1826 = vmatprep.subr.bf16.mxu0 0
        %1827 = vmatpush1.bf16.msra.mxu0 0
        %1828 = vmatprep.subr.bf16.mxu0 0
        %1829 = vmatpush1.bf16.msra.mxu0 %v1810
        %1830 = vmatprep.subr.bf16.mxu0 0
        %1831 = vmatpush1.bf16.msra.mxu0 %v1809
        %1832 = vmatprep.subr.bf16.mxu0 0
        %1833 = vmatpush2.bf16.msra.mxu0 0
        %1834 = vmatprep.subr.bf16.mxu0 0
        %1835 = vmatpush2.bf16.msra.mxu0 0
        %1836 = vmatprep.subr.bf16.mxu0 0
        %1837 = vmatpush2.bf16.msra.mxu0 0
        %1838 = vmatprep.subr.bf16.mxu0 0
        %1839 = vmatpush2.bf16.msra.mxu0 0
        %1840 = vmatprep.subr.bf16.mxu0 0
        %1841 = vmatpush2.bf16.msra.mxu0 0
        %1842 = vmatprep.subr.bf16.mxu0 0
        %1843 = vmatpush2.bf16.msra.mxu0 0
        %1844 = vmatprep.subr.bf16.mxu0 0
        %1845 = vmatpush2.bf16.msra.mxu0 0
        %1846 = vmatprep.subr.bf16.mxu0 0
        %1847 = vmatpush2.bf16.msra.mxu0 0
        %1848 = vmatprep.mubr.bf16.mxu0 0
        %1849 = vmatmul.mubr.bf16.gmra.mxu0 %v1814
        %v1850 = vpop.f32.mrf.mxu0
        %v1851 = vadd.f32 %v1799, %v1850
        %v1852 = vpop.f32.mrf.mxu0
        %v1853 = vpop.f32.mrf.mxu0
        %v1854 = vadd.f32 %v1799, %v1853
        %v1855 = vpop.f32.mrf.mxu0
        %1856 = vdwg.mxu0
        %v1857 = vmul.f32 %v1851, 0.5
        %v1858 = vmul.f32 %v1854, 0.5
        %v1859 = vmul.f32 %v1851, 0.044715
        %v1860 = vmul.f32 %v1854, 0.044715
        %v1861 = vmul.f32 %v1859, %v1851
        %v1862 = vmul.f32 %v1860, %v1854
        %v1863 = vmul.f32 %v1861, %v1851
        %v1864 = vmul.f32 %v1862, %v1854
        %v1865 = vadd.f32 %v1851, %v1863
        %v1866 = vadd.f32 %v1854, %v1864
        %v1867 = vmul.f32 %v1865, 0.7978846
        %v1868 = vmul.f32 %v1866, 0.7978846
        %v1869 = vtanh.pop %v1867
        %v1870 = vtanh.pop %v1868
        %v1871 = vadd.f32 %v1869, 1.0
        %v1872 = vadd.f32 %v1870, 1.0
        %v1873 = vmul.f32 %v1857, %v1871
        %v1874 = vmul.f32 %v1858, %v1872
        %v1875 = vpack.c.bf16 %v1874, %v1873
        %s1876 = scalar_lea.vmem %s14, 32
        %v1877 = vld [vmem:[%s1876] sm:$0xf]
        %v1878 = vld [vmem:[%s1876 + $0x4] sm:$0xf]
        %v1879 = vld [vmem:[%s1876 + $0x8] sm:$0xf]
        %v1880 = vld [vmem:[%s1876 + $0xc] sm:$0xf]
        %v1881 = vld [vmem:[%s1876 + $0x10] sm:$0xf]
        %v1882 = vld [vmem:[%s1876 + $0x14] sm:$0xf]
        %v1883 = vld [vmem:[%s1876 + $0x18] sm:$0xf]
        %v1884 = vld [vmem:[%s1876 + $0x1c] sm:$0xf]
        %s1885 = scalar_lea.vmem %s15, 1
        %v1886 = vld [vmem:[%s1885] sm:$0x1]
        %v1888 = vlaneseq
        %v1889 = vshrl.u32 %v1888, 7
        %v1890 = vsub.s32 0, %v1889
        %v1891 = vrot.slane %v1886, %v1890
        %v1901 = vunpack.c.l.b16 %v1877
        %v1902 = vunpack.c.l.b16 %v1878
        %v1903 = vunpack.c.l.b16 %v1879
        %v1904 = vunpack.c.l.b16 %v1880
        %v1905 = vunpack.c.l.b16 %v1881
        %v1906 = vunpack.c.l.b16 %v1882
        %v1907 = vunpack.c.l.b16 %v1883
        %v1908 = vunpack.c.l.b16 %v1884
        %v1909 = vpack.c.b16 %v1902, %v1901
        %v1910 = vpack.c.b16 %v1904, %v1903
        %v1911 = vpack.c.b16 %v1906, %v1905
        %v1912 = vpack.c.b16 %v1908, %v1907
        %v1918 = vsel %vm1252, %v1875, 0
        %1920 = vmatprep.subr.bf16.mxu0 0
        %1921 = vmatpush1.bf16.msra.mxu0 0
        %1922 = vmatprep.subr.bf16.mxu0 0
        %1923 = vmatpush1.bf16.msra.mxu0 0
        %1924 = vmatprep.subr.bf16.mxu0 0
        %1925 = vmatpush1.bf16.msra.mxu0 0
        %1926 = vmatprep.subr.bf16.mxu0 0
        %1927 = vmatpush1.bf16.msra.mxu0 0
        %1928 = vmatprep.subr.bf16.mxu0 0
        %1929 = vmatpush1.bf16.msra.mxu0 %v1912
        %1930 = vmatprep.subr.bf16.mxu0 0
        %1931 = vmatpush1.bf16.msra.mxu0 %v1911
        %1932 = vmatprep.subr.bf16.mxu0 0
        %1933 = vmatpush1.bf16.msra.mxu0 %v1910
        %1934 = vmatprep.subr.bf16.mxu0 0
        %1935 = vmatpush1.bf16.msra.mxu0 %v1909
        %1936 = vmatprep.subr.bf16.mxu0 0
        %1937 = vmatpush2.bf16.msra.mxu0 0
        %1938 = vmatprep.subr.bf16.mxu0 0
        %1939 = vmatpush2.bf16.msra.mxu0 0
        %1940 = vmatprep.subr.bf16.mxu0 0
        %1941 = vmatpush2.bf16.msra.mxu0 0
        %1942 = vmatprep.subr.bf16.mxu0 0
        %1943 = vmatpush2.bf16.msra.mxu0 0
        %1944 = vmatprep.subr.bf16.mxu0 0
        %1945 = vmatpush2.bf16.msra.mxu0 0
        %1946 = vmatprep.subr.bf16.mxu0 0
        %1947 = vmatpush2.bf16.msra.mxu0 0
        %1948 = vmatprep.subr.bf16.mxu0 0
        %1949 = vmatpush2.bf16.msra.mxu0 0
        %1950 = vmatprep.subr.bf16.mxu0 0
        %1951 = vmatpush2.bf16.msra.mxu0 0
        %1952 = vmatprep.mubr.bf16.mxu0 0
        %1953 = vmatmul.mubr.bf16.gmra.mxu0 %v1918
        %v1954 = vpop.f32.mrf.mxu0
        %v1955 = vadd.f32 %v1891, %v1954
        %v1956 = vpop.f32.mrf.mxu0
        %v1957 = vpop.f32.mrf.mxu0
        %v1958 = vadd.f32 %v1891, %v1957
        %v1959 = vpop.f32.mrf.mxu0
        %1960 = vdwg.mxu0
        %v1961 = vadd.f32 %v1739, %v1955
        %v1962 = vadd.f32 %v1740, %v1958
        %s1963 = scalar_lea.vmem %s514, 16 [#allocation2]
        %1964 = vst.msk [vmem:[%s1963] sm:$0xff] %vm647, %v1961
        %1965 = vst.msk [vmem:[%s1963 + $0x8] sm:$0xff] %vm647, %v1962
        %s1966 = sand.u32 %s379, 1
        %s1967 = scalar_lea.sflag [#allocation3], %s1966
        %s1968 = sand.u32 %s379, 1
        %s1969 = smul.addr %s1968, 32
        %s1970 = scalar_lea.vmem [#allocation2], %s1969
        // Predicated region
        $region85: #{tpu_custom_call.1} parent=83 // pred_check
          %p1971 = pneg %p389
        $region86: #{tpu_custom_call.1} parent=83 // pred_check_branch
          %1973 = sbr.rel (%p1971) target = $region88
        $region87: #{tpu_custom_call.1} parent=83 // pred_region
          %s1975 = ssub.s32 512, 512
          %1976 = vsyncadd %s1967, %s1975
          %s1977 = smul.addr %s30, 4
          %s1978 = smul.addr %s1977, 128
          %s1979 = scalar_lea.hbm %s16, %s1978
          %s1980 = sshll.u32 %s1970, 4
          %s1981 = int_to_ptr.vmem [resolvable:$true] %s1980
          %1986 = dma.vmem_to_hbm [thread:$0]  %s1981, 512, %s1979, %s1967, 128, 128, 8
        $region88: #{tpu_custom_call.1} parent=83 // pred_fallthru
          _
      $region84: #{tpu_custom_call.1} parent=5 // pred_fallthru
        _
      %p1987 = scmp.le.s32.totalorder 2, %s25
      // Predicated region
      $region89: #{tpu_custom_call.1} parent=5 // pred_check
        %p1988 = pneg %p1987
      $region90: #{tpu_custom_call.1} parent=5 // pred_check_branch
        %1990 = sbr.rel (%p1988) target = $region92
      $region91: #{tpu_custom_call.1} parent=5 // pred_region
        %s1991 = ssub.s32 %s25, 2
        // Predicated region
        $region93: #{tpu_custom_call.1} parent=91 // pred_check
          %p1992 = pneg %p395
        $region94: #{tpu_custom_call.1} parent=91 // pred_check_branch
          %1994 = sbr.rel (%p1992) target = $region96
        $region95: #{tpu_custom_call.1} parent=91 // pred_region
          %s1995 = sand.u32 %s380, 1
          %s1996 = scalar_lea.sflag [#allocation3], %s1995
          %s1997 = sand.u32 %s380, 1
          %s1998 = smul.addr %s1997, 32
          %s1999 = scalar_lea.vmem [#allocation2], %s1998
          %2000 = dma.done %s1996, 512
        $region96: #{tpu_custom_call.1} parent=91 // pred_fallthru
          _
      $region92: #{tpu_custom_call.1} parent=5 // pred_fallthru
        _
    $region6: #{tpu_custom_call.1} parent=1 // loop_footer
      %s29 = sadd.s32 1, %s25
    $region7: #{tpu_custom_call.1} parent=1 // loop_footer_branch
      %24 = sbr.rel target = $region3
    $region8: #{tpu_custom_call.1} parent=1 // loop_exit
      _
    %2001 = vsyncpa [#allocation3], 1
    %s2002 = scalar_lea.sflag [#allocation3], 1
    %2003 = vsyncpa %s2002, 1

</llo_original>
